<compile_context>
chip_gen: v5e
topology: v5e:2x2
jax: 0.10.0
libtpu: 0.0.40
codegen_flags: <defaults>
</compile_context>

<pallas_src>
import functools

import jax
import jax.numpy as jnp
from jax import lax
from jax.experimental import pallas as pl
from jax.experimental.pallas import tpu as pltpu

EPS = float(jnp.finfo(jnp.float32).eps)  # nn.RMSNorm default eps (finfo eps)


def _rmsnorm(v, w, eps=EPS):
    ms = jnp.mean(v * v, axis=-1, keepdims=True)
    return (v * lax.rsqrt(ms + eps)) * w


def _heads_per_group(num_heads, head_dim):
    """Smallest divisor g of num_heads with g*head_dim >= 128 (lane-dense slabs)."""
    for g in range(1, num_heads + 1):
        if num_heads % g == 0 and g * head_dim >= 128:
            return g
    return num_heads


def _choose_tile(T, target=256):
    """Sequence tile: prefer MXU-friendly 256/128, else largest multiple of 8."""
    if T <= target:
        return T
    for cand in (256, 128):
        if T % cand == 0:
            return cand
    for t in range(target, 7, -8):
        if T % t == 0:
            return t
    return T


def _vmem_limit(est_bytes):
    try:
        cap = pltpu.get_tpu_info().vmem_capacity_bytes
    except Exception:
        cap = 64 * 1024 * 1024            # conservative (v7x per-core VMEM)
    # leave ~8 MiB headroom for compiler-internal scratch
    return int(min(cap - 8 * 1024 * 1024, max(32 * 1024 * 1024, int(est_bytes))))


def _const_spec(shape, use_buffered):
    """Weight block: constant index map; single buffer when supported."""
    n = len(shape)
    idx = lambda b, i, _n=n: (0,) * _n
    if use_buffered:
        try:
            return pl.BlockSpec(shape, idx, pipeline_mode=pl.Buffered(1))
        except Exception:
            pass
    return pl.BlockSpec(shape, idx)


def _batch_spec(shape, use_buffered):
    """Block whose index only changes with the batch axis (K/V); single buffer."""
    idx = lambda b, i: (b, 0, 0)
    if use_buffered:
        try:
            return pl.BlockSpec(shape, idx, pipeline_mode=pl.Buffered(1))
        except Exception:
            pass
    return pl.BlockSpec(shape, idx)


# --------------------------------------------------------------------------- #
# Kernel 1: K / V projection (+ qk-norm on K), emitted once per sequence tile. #
# --------------------------------------------------------------------------- #
def _kv_project_kernel(x_ref, wn1_ref, wk_ref, wv_ref, wkn_ref, k_ref, v_ref,
                       *, num_heads, head_dim):
    xn = _rmsnorm(x_ref[0], wn1_ref[...]).astype(jnp.bfloat16)        # (t, C)
    k = jnp.dot(xn, wk_ref[...], preferred_element_type=jnp.float32)  # (t, C)
    v = jnp.dot(xn, wv_ref[...], preferred_element_type=jnp.float32)
    wkn = wkn_ref[...]
    outs = []
    for h in range(num_heads):                       # per-head qk-norm on K
        sl = slice(h * head_dim, (h + 1) * head_dim)
        outs.append(_rmsnorm(k[:, sl], wkn).astype(jnp.bfloat16))
    k_ref[0] = jnp.concatenate(outs, axis=-1) if num_heads > 1 else outs[0]
    v_ref[0] = v.astype(jnp.bfloat16)


def _kv_project(x, params, *, num_heads, tile, use_buffered):
    B, T, C = x.shape
    Dh = C // num_heads
    n = T // tile
    kernel = functools.partial(_kv_project_kernel, num_heads=num_heads,
                               head_dim=Dh)
    est = (2 * (2 * C * C)                 # Wk + Wv bf16, single-buffered
           + 2 * 4 * tile * C              # x tile (double-buffered)
           + 2 * 2 * 2 * tile * C          # K/V out tiles
           + 3 * 4 * tile * C)             # live f32 intermediates
    cost = pl.CostEstimate(
        flops=4 * B * T * C * C,
        transcendentals=0,
        bytes_accessed=4 * B * T * C + 2 * 2 * C * C + 2 * 2 * B * T * C)
    call = pl.pallas_call(
        kernel,
        out_shape=(jax.ShapeDtypeStruct((B, T, C), jnp.bfloat16),
                   jax.ShapeDtypeStruct((B, T, C), jnp.bfloat16)),
        grid_spec=pltpu.PrefetchScalarGridSpec(
            num_scalar_prefetch=0,
            grid=(B, n),
            in_specs=[
                pl.BlockSpec((1, tile, C), lambda b, i: (b, i, 0)),  # x tile
                _const_spec((1, C), use_buffered),                    # mod_norm1
                _const_spec((C, C), use_buffered),                    # Wk
                _const_spec((C, C), use_buffered),                    # Wv
                _const_spec((1, Dh), use_buffered),                   # norm_k
            ],
            out_specs=[pl.BlockSpec((1, tile, C), lambda b, i: (b, i, 0)),
                       pl.BlockSpec((1, tile, C), lambda b, i: (b, i, 0))],
        ),
        compiler_params=pltpu.CompilerParams(
            dimension_semantics=("parallel", "parallel"),
            vmem_limit_bytes=_vmem_limit(est)),
        cost_estimate=cost,
    )
    return call(x, params["wn1"], params["wk"], params["wv"], params["wkn"])


# --------------------------------------------------------------------------- #
# Kernel 2: per-query-tile attention + residual + SwiGLU MLP + residual.       #
# --------------------------------------------------------------------------- #
def _uvit_attn_mlp_kernel(x_ref, k_ref, v_ref, wn1_ref, wq_ref, wqn_ref,
                          wo_ref, bo_ref, wn3_ref, w1_ref, w3_ref, w2_ref,
                          o_ref, *, num_heads, head_dim):
    H, Dh = num_heads, head_dim
    g = _heads_per_group(H, Dh)               # heads per >=128-lane group

    xq = x_ref[0]                                                   # (Tq, C) f32
    xnq = _rmsnorm(xq, wn1_ref[...]).astype(jnp.bfloat16)
    q = jnp.dot(xnq, wq_ref[...], preferred_element_type=jnp.float32)

    k_all = k_ref[0]                           # (T, C) bf16, already qk-normed
    v_all = v_ref[0]                           # (T, C) bf16
    wqn = wqn_ref[...]                         # (1, Dh), softmax scale pre-folded

    # TODO(synk): switch to lax.fori_loop over groups for very large H/T.
    group_outs = []
    for gi in range(H // g):
        head_outs = []
        for hh in range(g):
            h = gi * g + hh
            sl = slice(h * Dh, (h + 1) * Dh)
            qh = _rmsnorm(q[:, sl], wqn).astype(jnp.bfloat16)       # (Tq, Dh)
            # contract last dims directly (no kh.T)
            s = lax.dot_general(qh, k_all[:, sl],
                                (((1,), (1,)), ((), ())),
                                preferred_element_type=jnp.float32)  # (Tq, T)
            p = jnp.exp(s - jnp.max(s, axis=-1, keepdims=True))
            rsum = jnp.sum(p, axis=-1, keepdims=True)
            oh = jnp.dot(p.astype(jnp.bfloat16), v_all[:, sl],
                         preferred_element_type=jnp.float32)         # (Tq, Dh)
            # post-PV normalization: scale (Tq,Dh), not (Tq,T); EUP reciprocal.
            # (approx=True gives ~1e-3 rel. error; make exact for training.)
            oh = oh * pl.reciprocal(rsum, approx=True)
            head_outs.append(oh.astype(jnp.bfloat16))
        group_outs.append(jnp.concatenate(head_outs, axis=-1) if g > 1
                          else head_outs[0])
    attn_heads = (jnp.concatenate(group_outs, axis=-1)
                  if len(group_outs) > 1 else group_outs[0])         # (Tq, C) bf16

    # single C-wide output projection over the concatenated heads
    attn = jnp.dot(attn_heads, wo_ref[...],
                   preferred_element_type=jnp.float32) + bo_ref[...]
    x_res = xq + attn

    # ---- SwiGLU MLP: x = x + w2(silu(w1(xn3)) * w3(xn3)) -------------------
    xn3 = _rmsnorm(x_res, wn3_ref[...]).astype(jnp.bfloat16)
    h1 = jnp.dot(xn3, w1_ref[...], preferred_element_type=jnp.float32)
    h3 = jnp.dot(xn3, w3_ref[...], preferred_element_type=jnp.float32)
    gated = (h1 * jax.nn.sigmoid(h1) * h3).astype(jnp.bfloat16)
    mlp = jnp.dot(gated, w2_ref[...], preferred_element_type=jnp.float32)

    o_ref[0] = x_res + mlp


def _attn_mlp(x, k, v, params, wqn_scaled, *, num_heads, q_tile, use_buffered):
    B, T, C = x.shape
    Dh = C // num_heads
    Hd = params["w1"].shape[1]
    nq = T // q_tile
    kernel = functools.partial(_uvit_attn_mlp_kernel, num_heads=num_heads,
                               head_dim=Dh)

    est = (2 * (2 * C * C + 3 * C * Hd)        # bf16 weights, single-buffered
           + 2 * 2 * T * C                     # K + V bf16, single-buffered
           + 2 * 2 * 4 * q_tile * C            # x in / out tiles (double-buffered)
           + 4 * q_tile * (2 * C + T + 2 * Hd)  # live f32 intermediates
           + 2 * q_tile * (2 * C + T + Hd))     # live bf16 intermediates
    cost = pl.CostEstimate(
        flops=2 * B * T * (2 * C * C + 2 * T * C + 3 * C * Hd),
        transcendentals=B * num_heads * T * T + B * T * Hd,
        bytes_accessed=(2 * (2 * C * C + 3 * C * Hd)
                        + 4 * B * T * C            # x in
                        + 2 * 2 * B * T * C        # K, V in
                        + 4 * B * T * C))          # out

    in_specs = [
        pl.BlockSpec((1, q_tile, C), lambda b, qi: (b, qi, 0)),   # x query tile
        _batch_spec((1, T, C), use_buffered),    # K (qk-normed, bf16), per batch
        _batch_spec((1, T, C), use_buffered),    # V (bf16), per batch
        _const_spec((1, C), use_buffered),       # mod_norm1 weight (f32)
        _const_spec((C, C), use_buffered),       # Wq (bf16)
        _const_spec((1, Dh), use_buffered),      # norm_q weight * scale (f32)
        _const_spec((C, C), use_buffered),       # Wproj (bf16)
        _const_spec((1, C), use_buffered),       # proj bias (f32)
        _const_spec((1, C), use_buffered),       # mod_norm3 weight (f32)
        _const_spec((C, Hd), use_buffered),      # mlp w1 (bf16)
        _const_spec((C, Hd), use_buffered),      # mlp w3 (bf16)
        _const_spec((Hd, C), use_buffered),      # mlp w2 (bf16)
    ]
    out_spec = pl.BlockSpec((1, q_tile, C), lambda b, qi: (b, qi, 0))

    call = pl.pallas_call(
        kernel,
        out_shape=jax.ShapeDtypeStruct((B, T, C), jnp.float32),
        grid_spec=pltpu.PrefetchScalarGridSpec(
            num_scalar_prefetch=0,
            grid=(B, nq),
            in_specs=in_specs,
            out_specs=out_spec,
        ),
        compiler_params=pltpu.CompilerParams(
            # no cross-iteration state -> both axes parallel (megacore on v7x)
            dimension_semantics=("parallel", "parallel"),
            vmem_limit_bytes=_vmem_limit(est)),
        cost_estimate=cost,
    )
    return call(x, k, v, params["wn1"], params["wq"], wqn_scaled,
                params["wo"], params["bo"], params["wn3"],
                params["w1"], params["w3"], params["w2"])


def uvit_block(x, params, *, num_heads, q_tile=None):
    B, T, C = x.shape
    assert C % num_heads == 0
    Dh = C // num_heads
    scale = Dh ** -0.5

    if q_tile is None:
        q_tile = _choose_tile(T)
    assert T % q_tile == 0

    # fold softmax scale into the q-RMSNorm weight (q enters scores linearly)
    wqn_scaled = (params["wqn"] * scale).astype(jnp.float32)

    def run(use_buffered):
        k, v = _kv_project(x, params, num_heads=num_heads, tile=q_tile,
                           use_buffered=use_buffered)
        return _attn_mlp(x, k, v, params, wqn_scaled, num_heads=num_heads,
                         q_tile=q_tile, use_buffered=use_buffered)

    try:
        return run(True)
    except Exception:
        # TODO(synk): pl.Buffered(1) unsupported by this jax/Mosaic version;
        # fall back to default double-buffered weight blocks.
        return run(False)


def init_params(key, dim, num_heads, mlp_ratio=4.0, multiple_of=256):
    """Deterministic synthetic parameters, shapes per UViTBlock.__init__.

    Matmul weights are stored bf16 (HBM traffic / MXU), norm weights & bias f32.
    All linear weights are pre-transposed to (in_features, out_features).
    """
    Dh = dim // num_heads
    mlp_hidden = int(dim * mlp_ratio)
    hidden = int(2 * mlp_hidden / 3)                       # FeedForward (SwiGLU)
    hidden = multiple_of * ((hidden + multiple_of - 1) // multiple_of)

    ks = jax.random.split(key, 11)

    def lin(k, fan_in, fan_out):
        bound = 1.0 / (fan_in ** 0.5)
        return jax.random.uniform(k, (fan_in, fan_out), jnp.float32,
                                  -bound, bound)

    wq = lin(ks[0], dim, dim).astype(jnp.bfloat16)      # to_q (qkv_bias=False)
    wk = lin(ks[1], dim, dim).astype(jnp.bfloat16)      # to_k
    wv = lin(ks[2], dim, dim).astype(jnp.bfloat16)      # to_v
    wo = lin(ks[3], dim, dim).astype(jnp.bfloat16)      # proj
    bo = jax.random.uniform(ks[4], (1, dim), jnp.float32,
                            -1.0 / dim ** 0.5, 1.0 / dim ** 0.5)
    w1 = lin(ks[5], dim, hidden).astype(jnp.bfloat16)   # mlp w1 (no bias)
    w3 = lin(ks[6], dim, hidden).astype(jnp.bfloat16)   # mlp w3
    w2 = lin(ks[7], hidden, dim).astype(jnp.bfloat16)   # mlp w2

    # RMSNorm weights (torch inits to ones; perturb for a non-trivial test)
    wn1 = 1.0 + 0.1 * jax.random.normal(ks[8], (1, dim), jnp.float32)
    wn3 = 1.0 + 0.1 * jax.random.normal(ks[9], (1, dim), jnp.float32)
    kq, kk = jax.random.split(ks[10])
    wqn = 1.0 + 0.1 * jax.random.normal(kq, (1, Dh), jnp.float32)
    wkn = 1.0 + 0.1 * jax.random.normal(kk, (1, Dh), jnp.float32)

    return dict(wn1=wn1, wq=wq, wk=wk, wv=wv, wqn=wqn, wkn=wkn,
                wo=wo, bo=bo, wn3=wn3, w1=w1, w3=w3, w2=w2)


def uvit_block_ref(x, params, num_heads):
    """Pure-JAX f32 reference mirroring the PyTorch forward (validation)."""
    B, T, C = x.shape
    Dh = C // num_heads

    def rms(v, w):
        return v * lax.rsqrt(jnp.mean(v * v, -1, keepdims=True) + EPS) * w

    f32 = lambda a: a.astype(jnp.float32)
    wq, wk, wv, wo = f32(params["wq"]), f32(params["wk"]), f32(params["wv"]), f32(params["wo"])
    w1, w3, w2 = f32(params["w1"]), f32(params["w3"]), f32(params["w2"])

    xn = rms(x, params["wn1"][0])
    q = (xn @ wq).reshape(B, T, num_heads, Dh).transpose(0, 2, 1, 3)
    k = (xn @ wk).reshape(B, T, num_heads, Dh).transpose(0, 2, 1, 3)
    v = (xn @ wv).reshape(B, T, num_heads, Dh).transpose(0, 2, 1, 3)
    q = rms(q, params["wqn"][0])
    k = rms(k, params["wkn"][0])
    s = jnp.einsum("bhtd,bhsd->bhts", q, k) * (Dh ** -0.5)
    p = jax.nn.softmax(s, axis=-1)
    o = jnp.einsum("bhts,bhsd->bhtd", p, v).transpose(0, 2, 1, 3).reshape(B, T, C)
    x = x + (o @ wo + params["bo"][0])

    xn3 = rms(x, params["wn3"][0])
    h1 = xn3 @ w1
    h3 = xn3 @ w3
    return x + (jax.nn.silu(h1) * h3) @ w2


if __name__ == "__main__":
    # Small shapes consistent with the module: B=2, T=16 tokens, dim=64, 4 heads
    B, T, dim, num_heads = 2, 16, 64, 4

    key = jax.random.PRNGKey(0)
    kx, kp = jax.random.split(key)
    x = jax.random.normal(kx, (B, T, dim), jnp.float32)
    params = init_params(kp, dim, num_heads)

    out = jax.block_until_ready(uvit_block(x, params, num_heads=num_heads))
    ref = jax.block_until_ready(uvit_block_ref(x, params, num_heads))

    assert out.shape == (B, T, dim)
    max_err = float(jnp.max(jnp.abs(out - ref)))
    # bf16 matmul operands (f32 accumulation) => loosened tolerance vs f32 ref
    assert jnp.allclose(out, ref, rtol=5e-2, atol=5e-2), \
        f"mismatch vs reference (max abs err {max_err})"
    print("KERNEL_OK")
</pallas_src>

<mosaic_0001>
module attributes {stable_mosaic.version = 11 : i64} {
  func.func @_kv_project_kernel(%arg0: i32, %arg1: i32, %arg2: memref<1x16x64xf32, #tpu.memory_space<vmem>>, %arg3: memref<1x64xf32, #tpu.memory_space<vmem>>, %arg4: memref<64x64xbf16, #tpu.memory_space<vmem>>, %arg5: memref<64x64xbf16, #tpu.memory_space<vmem>>, %arg6: memref<1x16xf32, #tpu.memory_space<vmem>>, %arg7: memref<1x16x64xbf16, #tpu.memory_space<vmem>>, %arg8: memref<1x16x64xbf16, #tpu.memory_space<vmem>>) attributes {dimension_semantics = [#tpu.dimension_semantics<parallel>, #tpu.dimension_semantics<parallel>], iteration_bounds = array<i64: 2, 1>, scalar_prefetch = 0 : i64, scratch_operands = 0 : i64, tpu.core_type = #tpu.core_type<tc>, window_params = [{transform_indices = @transform_0, window_bounds = array<i64: 1, 16, 64>}, {pipeline_mode = #tpu.pipeline_mode<synchronous>, transform_indices = @transform_1, window_bounds = array<i64: 1, 64>}, {pipeline_mode = #tpu.pipeline_mode<synchronous>, transform_indices = @transform_2, window_bounds = array<i64: 64, 64>}, {pipeline_mode = #tpu.pipeline_mode<synchronous>, transform_indices = @transform_3, window_bounds = array<i64: 64, 64>}, {pipeline_mode = #tpu.pipeline_mode<synchronous>, transform_indices = @transform_4, window_bounds = array<i64: 1, 16>}, {transform_indices = @transform_5, window_bounds = array<i64: 1, 16, 64>}, {transform_indices = @transform_6, window_bounds = array<i64: 1, 16, 64>}]} {
    %c0 = arith.constant 0 : index
    %c0_0 = arith.constant 0 : index
    %c0_1 = arith.constant 0 : index
    %0 = vector.load %arg2[%c0, %c0_0, %c0_1] : memref<1x16x64xf32, #tpu.memory_space<vmem>>, vector<1x16x64xf32>
    %1 = vector.shape_cast %0 : vector<1x16x64xf32> to vector<16x64xf32>
    %c0_2 = arith.constant 0 : index
    %c0_3 = arith.constant 0 : index
    %2 = vector.load %arg3[%c0_2, %c0_3] : memref<1x64xf32, #tpu.memory_space<vmem>>, vector<1x64xf32>
    %3 = arith.mulf %1, %1 : vector<16x64xf32>
    %cst = arith.constant dense<0.000000e+00> : vector<16xf32>
    %4 = vector.multi_reduction <add>, %3, %cst [1] : vector<16x64xf32> to vector<16xf32>
    %5 = vector.shape_cast %4 : vector<16xf32> to vector<16x1xf32>
    %cst_4 = arith.constant 6.400000e+01 : f32
    %6 = vector.broadcast %cst_4 : f32 to vector<16x1xf32>
    %7 = arith.divf %5, %6 : vector<16x1xf32>
    %cst_5 = arith.constant 1.1920929E-7 : f32
    %8 = vector.broadcast %cst_5 : f32 to vector<16x1xf32>
    %9 = arith.addf %7, %8 : vector<16x1xf32>
    %10 = math.rsqrt %9 : vector<16x1xf32>
    %11 = vector.broadcast %10 : vector<16x1xf32> to vector<16x64xf32>
    %12 = arith.mulf %1, %11 : vector<16x64xf32>
    %13 = vector.broadcast %2 : vector<1x64xf32> to vector<16x64xf32>
    %14 = arith.mulf %12, %13 : vector<16x64xf32>
    %15 = arith.truncf %14 : vector<16x64xf32> to vector<16x64xbf16>
    %c0_6 = arith.constant 0 : index
    %c0_7 = arith.constant 0 : index
    %16 = vector.load %arg4[%c0_6, %c0_7] : memref<64x64xbf16, #tpu.memory_space<vmem>>, vector<64x64xbf16>
    %cst_8 = arith.constant dense<0.000000e+00> : vector<16x64xf32>
    %17 = tpu.matmul %15, %16, %cst_8 {dimension_numbers = #tpu.dot_dimension_numbers<[1], [0], [0], [1], [0, 0, 1, 1], [], []>} : vector<16x64xbf16>, vector<64x64xbf16>, vector<16x64xf32> -> vector<16x64xf32>
    %c0_9 = arith.constant 0 : index
    %c0_10 = arith.constant 0 : index
    %18 = vector.load %arg5[%c0_9, %c0_10] : memref<64x64xbf16, #tpu.memory_space<vmem>>, vector<64x64xbf16>
    %cst_11 = arith.constant dense<0.000000e+00> : vector<16x64xf32>
    %19 = tpu.matmul %15, %18, %cst_11 {dimension_numbers = #tpu.dot_dimension_numbers<[1], [0], [0], [1], [0, 0, 1, 1], [], []>} : vector<16x64xbf16>, vector<64x64xbf16>, vector<16x64xf32> -> vector<16x64xf32>
    %c0_12 = arith.constant 0 : index
    %c0_13 = arith.constant 0 : index
    %20 = vector.load %arg6[%c0_12, %c0_13] : memref<1x16xf32, #tpu.memory_space<vmem>>, vector<1x16xf32>
    %21 = vector.extract_strided_slice %17 {offsets = [0, 0], sizes = [16, 16], strides = [1, 1]} : vector<16x64xf32> to vector<16x16xf32>
    %22 = arith.mulf %21, %21 : vector<16x16xf32>
    %cst_14 = arith.constant dense<0.000000e+00> : vector<16xf32>
    %23 = vector.multi_reduction <add>, %22, %cst_14 [1] : vector<16x16xf32> to vector<16xf32>
    %24 = vector.shape_cast %23 : vector<16xf32> to vector<16x1xf32>
    %cst_15 = arith.constant 1.600000e+01 : f32
    %25 = vector.broadcast %cst_15 : f32 to vector<16x1xf32>
    %26 = arith.divf %24, %25 : vector<16x1xf32>
    %cst_16 = arith.constant 1.1920929E-7 : f32
    %27 = vector.broadcast %cst_16 : f32 to vector<16x1xf32>
    %28 = arith.addf %26, %27 : vector<16x1xf32>
    %29 = math.rsqrt %28 : vector<16x1xf32>
    %30 = vector.broadcast %29 : vector<16x1xf32> to vector<16x16xf32>
    %31 = arith.mulf %21, %30 : vector<16x16xf32>
    %32 = vector.broadcast %20 : vector<1x16xf32> to vector<16x16xf32>
    %33 = arith.mulf %31, %32 : vector<16x16xf32>
    %34 = arith.truncf %33 : vector<16x16xf32> to vector<16x16xbf16>
    %35 = vector.extract_strided_slice %17 {offsets = [0, 16], sizes = [16, 16], strides = [1, 1]} : vector<16x64xf32> to vector<16x16xf32>
    %36 = arith.mulf %35, %35 : vector<16x16xf32>
    %cst_17 = arith.constant dense<0.000000e+00> : vector<16xf32>
    %37 = vector.multi_reduction <add>, %36, %cst_17 [1] : vector<16x16xf32> to vector<16xf32>
    %38 = vector.shape_cast %37 : vector<16xf32> to vector<16x1xf32>
    %cst_18 = arith.constant 1.600000e+01 : f32
    %39 = vector.broadcast %cst_18 : f32 to vector<16x1xf32>
    %40 = arith.divf %38, %39 : vector<16x1xf32>
    %cst_19 = arith.constant 1.1920929E-7 : f32
    %41 = vector.broadcast %cst_19 : f32 to vector<16x1xf32>
    %42 = arith.addf %40, %41 : vector<16x1xf32>
    %43 = math.rsqrt %42 : vector<16x1xf32>
    %44 = vector.broadcast %43 : vector<16x1xf32> to vector<16x16xf32>
    %45 = arith.mulf %35, %44 : vector<16x16xf32>
    %46 = vector.broadcast %20 : vector<1x16xf32> to vector<16x16xf32>
    %47 = arith.mulf %45, %46 : vector<16x16xf32>
    %48 = arith.truncf %47 : vector<16x16xf32> to vector<16x16xbf16>
    %49 = vector.extract_strided_slice %17 {offsets = [0, 32], sizes = [16, 16], strides = [1, 1]} : vector<16x64xf32> to vector<16x16xf32>
    %50 = arith.mulf %49, %49 : vector<16x16xf32>
    %cst_20 = arith.constant dense<0.000000e+00> : vector<16xf32>
    %51 = vector.multi_reduction <add>, %50, %cst_20 [1] : vector<16x16xf32> to vector<16xf32>
    %52 = vector.shape_cast %51 : vector<16xf32> to vector<16x1xf32>
    %cst_21 = arith.constant 1.600000e+01 : f32
    %53 = vector.broadcast %cst_21 : f32 to vector<16x1xf32>
    %54 = arith.divf %52, %53 : vector<16x1xf32>
    %cst_22 = arith.constant 1.1920929E-7 : f32
    %55 = vector.broadcast %cst_22 : f32 to vector<16x1xf32>
    %56 = arith.addf %54, %55 : vector<16x1xf32>
    %57 = math.rsqrt %56 : vector<16x1xf32>
    %58 = vector.broadcast %57 : vector<16x1xf32> to vector<16x16xf32>
    %59 = arith.mulf %49, %58 : vector<16x16xf32>
    %60 = vector.broadcast %20 : vector<1x16xf32> to vector<16x16xf32>
    %61 = arith.mulf %59, %60 : vector<16x16xf32>
    %62 = arith.truncf %61 : vector<16x16xf32> to vector<16x16xbf16>
    %63 = vector.extract_strided_slice %17 {offsets = [0, 48], sizes = [16, 16], strides = [1, 1]} : vector<16x64xf32> to vector<16x16xf32>
    %64 = arith.mulf %63, %63 : vector<16x16xf32>
    %cst_23 = arith.constant dense<0.000000e+00> : vector<16xf32>
    %65 = vector.multi_reduction <add>, %64, %cst_23 [1] : vector<16x16xf32> to vector<16xf32>
    %66 = vector.shape_cast %65 : vector<16xf32> to vector<16x1xf32>
    %cst_24 = arith.constant 1.600000e+01 : f32
    %67 = vector.broadcast %cst_24 : f32 to vector<16x1xf32>
    %68 = arith.divf %66, %67 : vector<16x1xf32>
    %cst_25 = arith.constant 1.1920929E-7 : f32
    %69 = vector.broadcast %cst_25 : f32 to vector<16x1xf32>
    %70 = arith.addf %68, %69 : vector<16x1xf32>
    %71 = math.rsqrt %70 : vector<16x1xf32>
    %72 = vector.broadcast %71 : vector<16x1xf32> to vector<16x16xf32>
    %73 = arith.mulf %63, %72 : vector<16x16xf32>
    %74 = vector.broadcast %20 : vector<1x16xf32> to vector<16x16xf32>
    %75 = arith.mulf %73, %74 : vector<16x16xf32>
    %76 = arith.truncf %75 : vector<16x16xf32> to vector<16x16xbf16>
    %77 = tpu.concatenate %34, %48, %62, %76 in 1 : vector<16x16xbf16>, vector<16x16xbf16>, vector<16x16xbf16>, vector<16x16xbf16> -> vector<16x64xbf16>
    %c0_26 = arith.constant 0 : index
    %c0_27 = arith.constant 0 : index
    %c0_28 = arith.constant 0 : index
    %78 = vector.load %arg7[%c0_26, %c0_27, %c0_28] : memref<1x16x64xbf16, #tpu.memory_space<vmem>>, vector<1x16x64xbf16>
    %79 = vector.shape_cast %78 : vector<1x16x64xbf16> to vector<16x64xbf16>
    %80 = vector.shape_cast %77 : vector<16x64xbf16> to vector<1x16x64xbf16>
    tpu.vector_store %arg7[%c0_26, %c0_27, %c0_28], %80 {strides = array<i32>} : memref<1x16x64xbf16, #tpu.memory_space<vmem>>, vector<1x16x64xbf16>,
    %81 = arith.truncf %19 : vector<16x64xf32> to vector<16x64xbf16>
    %c0_29 = arith.constant 0 : index
    %c0_30 = arith.constant 0 : index
    %c0_31 = arith.constant 0 : index
    %82 = vector.load %arg8[%c0_29, %c0_30, %c0_31] : memref<1x16x64xbf16, #tpu.memory_space<vmem>>, vector<1x16x64xbf16>
    %83 = vector.shape_cast %82 : vector<1x16x64xbf16> to vector<16x64xbf16>
    %84 = vector.shape_cast %81 : vector<16x64xbf16> to vector<1x16x64xbf16>
    tpu.vector_store %arg8[%c0_29, %c0_30, %c0_31], %84 {strides = array<i32>} : memref<1x16x64xbf16, #tpu.memory_space<vmem>>, vector<1x16x64xbf16>,
    return
  }
  func.func @transform_0(%arg0: i32, %arg1: i32) -> (i32, i32, i32) {
    %c0_i32 = arith.constant 0 : i32
    %c0_i32_0 = arith.constant 0 : i32
    return %arg0, %arg1, %c0_i32 : i32, i32, i32
  }
  func.func @transform_1(%arg0: i32, %arg1: i32) -> (i32, i32) {
    %c0_i32 = arith.constant 0 : i32
    %c0_i32_0 = arith.constant 0 : i32
    %c0_i32_1 = arith.constant 0 : i32
    return %c0_i32, %c0_i32_0 : i32, i32
  }
  func.func @transform_2(%arg0: i32, %arg1: i32) -> (i32, i32) {
    %c0_i32 = arith.constant 0 : i32
    %c0_i32_0 = arith.constant 0 : i32
    %c0_i32_1 = arith.constant 0 : i32
    return %c0_i32, %c0_i32_0 : i32, i32
  }
  func.func @transform_3(%arg0: i32, %arg1: i32) -> (i32, i32) {
    %c0_i32 = arith.constant 0 : i32
    %c0_i32_0 = arith.constant 0 : i32
    %c0_i32_1 = arith.constant 0 : i32
    return %c0_i32, %c0_i32_0 : i32, i32
  }
  func.func @transform_4(%arg0: i32, %arg1: i32) -> (i32, i32) {
    %c0_i32 = arith.constant 0 : i32
    %c0_i32_0 = arith.constant 0 : i32
    %c0_i32_1 = arith.constant 0 : i32
    return %c0_i32, %c0_i32_0 : i32, i32
  }
  func.func @transform_5(%arg0: i32, %arg1: i32) -> (i32, i32, i32) {
    %c0_i32 = arith.constant 0 : i32
    %c0_i32_0 = arith.constant 0 : i32
    return %arg0, %arg1, %c0_i32 : i32, i32, i32
  }
  func.func @transform_6(%arg0: i32, %arg1: i32) -> (i32, i32, i32) {
    %c0_i32 = arith.constant 0 : i32
    %c0_i32_0 = arith.constant 0 : i32
    return %arg0, %arg1, %c0_i32 : i32, i32, i32
  }
}

module attributes {stable_mosaic.version = 11 : i64} {
  func.func @_kv_project_kernel(%arg0: i32, %arg1: i32, %arg2: memref<1x16x64xf32, #tpu.memory_space<vmem>>, %arg3: memref<1x64xf32, #tpu.memory_space<vmem>>, %arg4: memref<64x64xbf16, #tpu.memory_space<vmem>>, %arg5: memref<64x64xbf16, #tpu.memory_space<vmem>>, %arg6: memref<1x16xf32, #tpu.memory_space<vmem>>, %arg7: memref<1x16x64xbf16, #tpu.memory_space<vmem>>, %arg8: memref<1x16x64xbf16, #tpu.memory_space<vmem>>) attributes {dimension_semantics = [#tpu.dimension_semantics<parallel>, #tpu.dimension_semantics<parallel>], iteration_bounds = array<i64: 2, 1>, scalar_prefetch = 0 : i64, scratch_operands = 0 : i64, tpu.core_type = #tpu.core_type<tc>, window_params = [{transform_indices = @transform_0, window_bounds = array<i64: 1, 16, 64>}, {pipeline_mode = #tpu.pipeline_mode<synchronous>, transform_indices = @transform_1, window_bounds = array<i64: 1, 64>}, {pipeline_mode = #tpu.pipeline_mode<synchronous>, transform_indices = @transform_2, window_bounds = array<i64: 64, 64>}, {pipeline_mode = #tpu.pipeline_mode<synchronous>, transform_indices = @transform_3, window_bounds = array<i64: 64, 64>}, {pipeline_mode = #tpu.pipeline_mode<synchronous>, transform_indices = @transform_4, window_bounds = array<i64: 1, 16>}, {transform_indices = @transform_5, window_bounds = array<i64: 1, 16, 64>}, {transform_indices = @transform_6, window_bounds = array<i64: 1, 16, 64>}]} {
    %c0 = arith.constant 0 : index
    %c0_0 = arith.constant 0 : index
    %c0_1 = arith.constant 0 : index
    %0 = vector.load %arg2[%c0, %c0_0, %c0_1] : memref<1x16x64xf32, #tpu.memory_space<vmem>>, vector<1x16x64xf32>
    %1 = vector.shape_cast %0 : vector<1x16x64xf32> to vector<16x64xf32>
    %c0_2 = arith.constant 0 : index
    %c0_3 = arith.constant 0 : index
    %2 = vector.load %arg3[%c0_2, %c0_3] : memref<1x64xf32, #tpu.memory_space<vmem>>, vector<1x64xf32>
    %3 = arith.mulf %1, %1 : vector<16x64xf32>
    %cst = arith.constant dense<0.000000e+00> : vector<16xf32>
    %4 = vector.multi_reduction <add>, %3, %cst [1] : vector<16x64xf32> to vector<16xf32>
    %5 = vector.shape_cast %4 : vector<16xf32> to vector<16x1xf32>
    %cst_4 = arith.constant 6.400000e+01 : f32
    %6 = vector.broadcast %cst_4 : f32 to vector<16x1xf32>
    %7 = arith.divf %5, %6 : vector<16x1xf32>
    %cst_5 = arith.constant 1.1920929E-7 : f32
    %8 = vector.broadcast %cst_5 : f32 to vector<16x1xf32>
    %9 = arith.addf %7, %8 : vector<16x1xf32>
    %10 = math.rsqrt %9 : vector<16x1xf32>
    %11 = vector.broadcast %10 : vector<16x1xf32> to vector<16x64xf32>
    %12 = arith.mulf %1, %11 : vector<16x64xf32>
    %13 = vector.broadcast %2 : vector<1x64xf32> to vector<16x64xf32>
    %14 = arith.mulf %12, %13 : vector<16x64xf32>
    %15 = arith.truncf %14 : vector<16x64xf32> to vector<16x64xbf16>
    %c0_6 = arith.constant 0 : index
    %c0_7 = arith.constant 0 : index
    %16 = vector.load %arg4[%c0_6, %c0_7] : memref<64x64xbf16, #tpu.memory_space<vmem>>, vector<64x64xbf16>
    %cst_8 = arith.constant dense<0.000000e+00> : vector<16x64xf32>
    %17 = tpu.matmul %15, %16, %cst_8 {dimension_numbers = #tpu.dot_dimension_numbers<[1], [0], [0], [1], [0, 0, 1, 1], [], []>} : vector<16x64xbf16>, vector<64x64xbf16>, vector<16x64xf32> -> vector<16x64xf32>
    %c0_9 = arith.constant 0 : index
    %c0_10 = arith.constant 0 : index
    %18 = vector.load %arg5[%c0_9, %c0_10] : memref<64x64xbf16, #tpu.memory_space<vmem>>, vector<64x64xbf16>
    %cst_11 = arith.constant dense<0.000000e+00> : vector<16x64xf32>
    %19 = tpu.matmul %15, %18, %cst_11 {dimension_numbers = #tpu.dot_dimension_numbers<[1], [0], [0], [1], [0, 0, 1, 1], [], []>} : vector<16x64xbf16>, vector<64x64xbf16>, vector<16x64xf32> -> vector<16x64xf32>
    %c0_12 = arith.constant 0 : index
    %c0_13 = arith.constant 0 : index
    %20 = vector.load %arg6[%c0_12, %c0_13] : memref<1x16xf32, #tpu.memory_space<vmem>>, vector<1x16xf32>
    %21 = vector.extract_strided_slice %17 {offsets = [0, 0], sizes = [16, 16], strides = [1, 1]} : vector<16x64xf32> to vector<16x16xf32>
    %22 = arith.mulf %21, %21 : vector<16x16xf32>
    %cst_14 = arith.constant dense<0.000000e+00> : vector<16xf32>
    %23 = vector.multi_reduction <add>, %22, %cst_14 [1] : vector<16x16xf32> to vector<16xf32>
    %24 = vector.shape_cast %23 : vector<16xf32> to vector<16x1xf32>
    %cst_15 = arith.constant 1.600000e+01 : f32
    %25 = vector.broadcast %cst_15 : f32 to vector<16x1xf32>
    %26 = arith.divf %24, %25 : vector<16x1xf32>
    %cst_16 = arith.constant 1.1920929E-7 : f32
    %27 = vector.broadcast %cst_16 : f32 to vector<16x1xf32>
    %28 = arith.addf %26, %27 : vector<16x1xf32>
    %29 = math.rsqrt %28 : vector<16x1xf32>
    %30 = vector.broadcast %29 : vector<16x1xf32> to vector<16x16xf32>
    %31 = arith.mulf %21, %30 : vector<16x16xf32>
    %32 = vector.broadcast %20 : vector<1x16xf32> to vector<16x16xf32>
    %33 = arith.mulf %31, %32 : vector<16x16xf32>
    %34 = arith.truncf %33 : vector<16x16xf32> to vector<16x16xbf16>
    %35 = vector.extract_strided_slice %17 {offsets = [0, 16], sizes = [16, 16], strides = [1, 1]} : vector<16x64xf32> to vector<16x16xf32>
    %36 = arith.mulf %35, %35 : vector<16x16xf32>
    %cst_17 = arith.constant dense<0.000000e+00> : vector<16xf32>
    %37 = vector.multi_reduction <add>, %36, %cst_17 [1] : vector<16x16xf32> to vector<16xf32>
    %38 = vector.shape_cast %37 : vector<16xf32> to vector<16x1xf32>
    %cst_18 = arith.constant 1.600000e+01 : f32
    %39 = vector.broadcast %cst_18 : f32 to vector<16x1xf32>
    %40 = arith.divf %38, %39 : vector<16x1xf32>
    %cst_19 = arith.constant 1.1920929E-7 : f32
    %41 = vector.broadcast %cst_19 : f32 to vector<16x1xf32>
    %42 = arith.addf %40, %41 : vector<16x1xf32>
    %43 = math.rsqrt %42 : vector<16x1xf32>
    %44 = vector.broadcast %43 : vector<16x1xf32> to vector<16x16xf32>
    %45 = arith.mulf %35, %44 : vector<16x16xf32>
    %46 = vector.broadcast %20 : vector<1x16xf32> to vector<16x16xf32>
    %47 = arith.mulf %45, %46 : vector<16x16xf32>
    %48 = arith.truncf %47 : vector<16x16xf32> to vector<16x16xbf16>
    %49 = vector.extract_strided_slice %17 {offsets = [0, 32], sizes = [16, 16], strides = [1, 1]} : vector<16x64xf32> to vector<16x16xf32>
    %50 = arith.mulf %49, %49 : vector<16x16xf32>
    %cst_20 = arith.constant dense<0.000000e+00> : vector<16xf32>
    %51 = vector.multi_reduction <add>, %50, %cst_20 [1] : vector<16x16xf32> to vector<16xf32>
    %52 = vector.shape_cast %51 : vector<16xf32> to vector<16x1xf32>
    %cst_21 = arith.constant 1.600000e+01 : f32
    %53 = vector.broadcast %cst_21 : f32 to vector<16x1xf32>
    %54 = arith.divf %52, %53 : vector<16x1xf32>
    %cst_22 = arith.constant 1.1920929E-7 : f32
    %55 = vector.broadcast %cst_22 : f32 to vector<16x1xf32>
    %56 = arith.addf %54, %55 : vector<16x1xf32>
    %57 = math.rsqrt %56 : vector<16x1xf32>
    %58 = vector.broadcast %57 : vector<16x1xf32> to vector<16x16xf32>
    %59 = arith.mulf %49, %58 : vector<16x16xf32>
    %60 = vector.broadcast %20 : vector<1x16xf32> to vector<16x16xf32>
    %61 = arith.mulf %59, %60 : vector<16x16xf32>
    %62 = arith.truncf %61 : vector<16x16xf32> to vector<16x16xbf16>
    %63 = vector.extract_strided_slice %17 {offsets = [0, 48], sizes = [16, 16], strides = [1, 1]} : vector<16x64xf32> to vector<16x16xf32>
    %64 = arith.mulf %63, %63 : vector<16x16xf32>
    %cst_23 = arith.constant dense<0.000000e+00> : vector<16xf32>
    %65 = vector.multi_reduction <add>, %64, %cst_23 [1] : vector<16x16xf32> to vector<16xf32>
    %66 = vector.shape_cast %65 : vector<16xf32> to vector<16x1xf32>
    %cst_24 = arith.constant 1.600000e+01 : f32
    %67 = vector.broadcast %cst_24 : f32 to vector<16x1xf32>
    %68 = arith.divf %66, %67 : vector<16x1xf32>
    %cst_25 = arith.constant 1.1920929E-7 : f32
    %69 = vector.broadcast %cst_25 : f32 to vector<16x1xf32>
    %70 = arith.addf %68, %69 : vector<16x1xf32>
    %71 = math.rsqrt %70 : vector<16x1xf32>
    %72 = vector.broadcast %71 : vector<16x1xf32> to vector<16x16xf32>
    %73 = arith.mulf %63, %72 : vector<16x16xf32>
    %74 = vector.broadcast %20 : vector<1x16xf32> to vector<16x16xf32>
    %75 = arith.mulf %73, %74 : vector<16x16xf32>
    %76 = arith.truncf %75 : vector<16x16xf32> to vector<16x16xbf16>
    %77 = tpu.concatenate %34, %48, %62, %76 in 1 : vector<16x16xbf16>, vector<16x16xbf16>, vector<16x16xbf16>, vector<16x16xbf16> -> vector<16x64xbf16>
    %c0_26 = arith.constant 0 : index
    %c0_27 = arith.constant 0 : index
    %c0_28 = arith.constant 0 : index
    %78 = vector.load %arg7[%c0_26, %c0_27, %c0_28] : memref<1x16x64xbf16, #tpu.memory_space<vmem>>, vector<1x16x64xbf16>
    %79 = vector.shape_cast %78 : vector<1x16x64xbf16> to vector<16x64xbf16>
    %80 = vector.shape_cast %77 : vector<16x64xbf16> to vector<1x16x64xbf16>
    tpu.vector_store %arg7[%c0_26, %c0_27, %c0_28], %80 {strides = array<i32>} : memref<1x16x64xbf16, #tpu.memory_space<vmem>>, vector<1x16x64xbf16>,
    %81 = arith.truncf %19 : vector<16x64xf32> to vector<16x64xbf16>
    %c0_29 = arith.constant 0 : index
    %c0_30 = arith.constant 0 : index
    %c0_31 = arith.constant 0 : index
    %82 = vector.load %arg8[%c0_29, %c0_30, %c0_31] : memref<1x16x64xbf16, #tpu.memory_space<vmem>>, vector<1x16x64xbf16>
    %83 = vector.shape_cast %82 : vector<1x16x64xbf16> to vector<16x64xbf16>
    %84 = vector.shape_cast %81 : vector<16x64xbf16> to vector<1x16x64xbf16>
    tpu.vector_store %arg8[%c0_29, %c0_30, %c0_31], %84 {strides = array<i32>} : memref<1x16x64xbf16, #tpu.memory_space<vmem>>, vector<1x16x64xbf16>,
    return
  }
  func.func @transform_0(%arg0: i32, %arg1: i32) -> (i32, i32, i32) {
    %c0_i32 = arith.constant 0 : i32
    %c0_i32_0 = arith.constant 0 : i32
    return %arg0, %arg1, %c0_i32 : i32, i32, i32
  }
  func.func @transform_1(%arg0: i32, %arg1: i32) -> (i32, i32) {
    %c0_i32 = arith.constant 0 : i32
    %c0_i32_0 = arith.constant 0 : i32
    %c0_i32_1 = arith.constant 0 : i32
    return %c0_i32, %c0_i32_0 : i32, i32
  }
  func.func @transform_2(%arg0: i32, %arg1: i32) -> (i32, i32) {
    %c0_i32 = arith.constant 0 : i32
    %c0_i32_0 = arith.constant 0 : i32
    %c0_i32_1 = arith.constant 0 : i32
    return %c0_i32, %c0_i32_0 : i32, i32
  }
  func.func @transform_3(%arg0: i32, %arg1: i32) -> (i32, i32) {
    %c0_i32 = arith.constant 0 : i32
    %c0_i32_0 = arith.constant 0 : i32
    %c0_i32_1 = arith.constant 0 : i32
    return %c0_i32, %c0_i32_0 : i32, i32
  }
  func.func @transform_4(%arg0: i32, %arg1: i32) -> (i32, i32) {
    %c0_i32 = arith.constant 0 : i32
    %c0_i32_0 = arith.constant 0 : i32
    %c0_i32_1 = arith.constant 0 : i32
    return %c0_i32, %c0_i32_0 : i32, i32
  }
  func.func @transform_5(%arg0: i32, %arg1: i32) -> (i32, i32, i32) {
    %c0_i32 = arith.constant 0 : i32
    %c0_i32_0 = arith.constant 0 : i32
    return %arg0, %arg1, %c0_i32 : i32, i32, i32
  }
  func.func @transform_6(%arg0: i32, %arg1: i32) -> (i32, i32, i32) {
    %c0_i32 = arith.constant 0 : i32
    %c0_i32_0 = arith.constant 0 : i32
    return %arg0, %arg1, %c0_i32 : i32, i32, i32
  }
}

</mosaic_0001>

<llo_original>
// kernel: tpu_custom_call.1
$region0: #{tpu_custom_call.1}
  #allocation0 [shape = 'u32[]', space=smem, size = 0x4, offset = 0x4, fixed_abs, tag = 'smem constant byte address 0x4 - core index']
  #allocation1 [shape = 'u32[72,128]{1,0:T(1,128)}', space=vmem, size = 0x9000, scoped, tag = 'internal scratch']
  %s0 = inlined_call_operand.hbm [shape: f32[2,16,64], index: 0, kind: input, shape index: {}]
  %s1 = inlined_call_operand.hbm [shape: f32[1,64], index: 1, kind: input, shape index: {}]
  %s2 = inlined_call_operand.hbm [shape: bf16[64,64], index: 2, kind: input, shape index: {}]
  %s3 = inlined_call_operand.hbm [shape: bf16[64,64], index: 3, kind: input, shape index: {}]
  %s4 = inlined_call_operand.vmem [shape: f32[1,16], index: 4, kind: input, shape index: {}]
  %s5 = inlined_call_operand.hbm [shape: bf16[2,16,64], index: 5, kind: output, shape index: {0}]
  %s6 = inlined_call_operand.hbm [shape: bf16[2,16,64], index: 6, kind: output, shape index: {1}]
  %7 = xla_tuple %s5, %s6
  %s8 = sld [smem:[#allocation0]]
  $region77: #{tpu_custom_call.1} parent=0
    _
  %s10 = ssub.s32 1, %s8
  %s11 = scalar_select 0, %s10, %s8
  $region1: #{tpu_custom_call.1} parent=0
    #allocation2 [shape = 'u8[16384]{0}', space=vmem, size = 0x4000, scoped, tag = 'input window, operand 0']
    #allocation3 [shape = 's32[2]{0}', space=sflag, size = 0x8, scoped, tag = 'scoped memory for tpu_custom_call.1']
    #allocation4 [shape = 's32[2]{0}', space=sflag, size = 0x8, scoped, tag = 'scoped memory for tpu_custom_call.1']
    #allocation5 [shape = 'u8[512]{0}', space=vmem, size = 0x400, scoped, tag = 'input window, operand 1, single buffered']
    #allocation6 [shape = 's32[1]{0}', space=sflag, size = 0x4, scoped, tag = 'scoped memory for tpu_custom_call.1']
    #allocation7 [shape = 'u8[16384]{0}', space=vmem, size = 0x4000, scoped, tag = 'input window, operand 2, single buffered']
    #allocation8 [shape = 'u8[16384]{0}', space=vmem, size = 0x4000, scoped, tag = 'input window, operand 3, single buffered']
    #allocation9 [shape = 's32[1]{0}', space=sflag, size = 0x4, scoped, tag = 'scoped memory for tpu_custom_call.1']
    #allocation10 [shape = 'u8[8192]{0}', space=vmem, size = 0x2000, scoped, tag = 'output window, operand 0']
    #allocation11 [shape = 'u8[8192]{0}', space=vmem, size = 0x2000, scoped, tag = 'output window, operand 1']
    #allocation12 [shape = 's32[2]{0}', space=sflag, size = 0x8, scoped, tag = 'scoped memory for tpu_custom_call.1']
    %12 = vsyncpa [#allocation3], 0
    %s13 = scalar_lea.sflag [#allocation3], 1
    %14 = vsyncpa %s13, 0
    %15 = vsyncpa [#allocation6], 0
    %16 = vsyncpa [#allocation9], 0
    %17 = vsyncpa [#allocation4], 0
    %s18 = scalar_lea.sflag [#allocation4], 1
    %19 = vsyncpa %s18, 0
    %20 = vsyncpa [#allocation12], 0
    %s21 = scalar_lea.sflag [#allocation12], 1
    %22 = vsyncpa %s21, 0
    loop: start=0, step=1, limit=4
    $region2: #{tpu_custom_call.1} parent=1 // loop_pre_header
      _
    $region3: #{tpu_custom_call.1} parent=1 // loop_header
      %s24 = sphi 0, %s28
      %p25 = scmp.ge.s32.totalorder %s24, 4
      %s31 = sphi 0, %s43
      %s32 = sphi 0, %s39
      %s33 = sphi 0, %s31
      %s34 = sphi 0, %s32
      %s35 = sphi 0, %s33
      %s36 = sphi 0, %s34
      %s48 = sphi 0, %s50
      %s51 = sphi 0, %s48
      %s52 = sphi 0, %s51
      %s68 = sphi 0, %s52
      %s72 = sphi 0, %s72
      %s74 = sphi 0, %s72
      %s75 = sphi 0, %s74
      %s89 = sphi 0, %s75
      %s93 = sphi 0, %s93
      %s95 = sphi 0, %s93
      %s96 = sphi 0, %s95
      %s110 = sphi 0, %s96
      %s114 = sphi 0, %s114
      %s116 = sphi 0, %s114
      %s117 = sphi 0, %s116
      %s131 = sphi 0, %s117
      %s135 = sphi 0, %s135
      %s137 = sphi 0, %s135
      %s138 = sphi 0, %s137
      %s152 = sphi 0, %s138
      %s160 = sphi 0, %s162
      %s163 = sphi 0, %s160
      %s164 = sphi 0, %s163
      %s180 = sphi 0, %s164
      %s188 = sphi 0, %s190
      %s191 = sphi 0, %s188
      %s192 = sphi 0, %s191
      %s208 = sphi 0, %s192
    $region4: #{tpu_custom_call.1} parent=1 // loop_header_branch
      %27 = sbr.rel (%p25) target = $region8
    $region5: #{tpu_custom_call.1} parent=1 // loop_body
      %s29 = ssub.s32 %s24, 1
      %s30 = ssub.s32 %s24, 2
      %s37 = sadd.s32 1, %s32
      %p38 = scmp.ge.s32.totalorder %s37, 1
      %s39 = scalar_select %p38, 0, %s37
      %s40 = sadd.s32 1, %s31
      %s41 = scalar_select %p38, %s40, %s31
      %p42 = scmp.ge.s32.totalorder %s41, 2
      %s43 = scalar_select %p42, 0, %s41
      %s44 = ssub.s32 %s31, %s43
      %s45 = ssub.s32 %s32, %s39
      %s46 = sor.u32 %s44, %s45
      %p47 = scmp.eq.s32.totalorder %s46, 0
      %s49 = sadd.s32 %s48, 1
      %s50 = scalar_select %p47, %s48, %s49
      %p53 = pneg %p47
      %p54 = scmp.eq.s32.totalorder %s24, 1
      %p55 = por %p53, %p54
      %p56 = scmp.ne.s32.totalorder %s48, %s51
      %p57 = scmp.eq.s32.totalorder %s24, 0
      %p58 = por %p56, %p57
      %p59 = scmp.ne.s32.totalorder %s48, %s51
      %p60 = scmp.eq.s32.totalorder %s29, 1
      %p61 = por %p59, %p60
      %p62 = scmp.ne.s32.totalorder %s51, %s52
      %p63 = scmp.eq.s32.totalorder %s29, 0
      %p64 = por %p62, %p63
      %p65 = scmp.ne.s32.totalorder %s51, %s52
      %p66 = scmp.eq.s32.totalorder %s30, 1
      %p67 = por %p65, %p66
      %p69 = scmp.ne.s32.totalorder %s52, %s68
      %p70 = scmp.eq.s32.totalorder %s30, 0
      %p71 = por %p69, %p70
      %s73 = sadd.s32 %s72, 1
      %p76 = scmp.eq.s32.totalorder %s24, 1
      %p77 = scmp.ne.s32.totalorder %s72, %s74
      %p78 = scmp.eq.s32.totalorder %s24, 0
      %p79 = por %p77, %p78
      %p80 = scmp.ne.s32.totalorder %s72, %s74
      %p81 = scmp.eq.s32.totalorder %s29, 1
      %p82 = por %p80, %p81
      %p83 = scmp.ne.s32.totalorder %s74, %s75
      %p84 = scmp.eq.s32.totalorder %s29, 0
      %p85 = por %p83, %p84
      %p86 = scmp.ne.s32.totalorder %s74, %s75
      %p87 = scmp.eq.s32.totalorder %s30, 1
      %p88 = por %p86, %p87
      %p90 = scmp.ne.s32.totalorder %s75, %s89
      %p91 = scmp.eq.s32.totalorder %s30, 0
      %p92 = por %p90, %p91
      %s94 = sadd.s32 %s93, 1
      %p97 = scmp.eq.s32.totalorder %s24, 1
      %p98 = scmp.ne.s32.totalorder %s93, %s95
      %p99 = scmp.eq.s32.totalorder %s24, 0
      %p100 = por %p98, %p99
      %p101 = scmp.ne.s32.totalorder %s93, %s95
      %p102 = scmp.eq.s32.totalorder %s29, 1
      %p103 = por %p101, %p102
      %p104 = scmp.ne.s32.totalorder %s95, %s96
      %p105 = scmp.eq.s32.totalorder %s29, 0
      %p106 = por %p104, %p105
      %p107 = scmp.ne.s32.totalorder %s95, %s96
      %p108 = scmp.eq.s32.totalorder %s30, 1
      %p109 = por %p107, %p108
      %p111 = scmp.ne.s32.totalorder %s96, %s110
      %p112 = scmp.eq.s32.totalorder %s30, 0
      %p113 = por %p111, %p112
      %s115 = sadd.s32 %s114, 1
      %p118 = scmp.eq.s32.totalorder %s24, 1
      %p119 = scmp.ne.s32.totalorder %s114, %s116
      %p120 = scmp.eq.s32.totalorder %s24, 0
      %p121 = por %p119, %p120
      %p122 = scmp.ne.s32.totalorder %s114, %s116
      %p123 = scmp.eq.s32.totalorder %s29, 1
      %p124 = por %p122, %p123
      %p125 = scmp.ne.s32.totalorder %s116, %s117
      %p126 = scmp.eq.s32.totalorder %s29, 0
      %p127 = por %p125, %p126
      %p128 = scmp.ne.s32.totalorder %s116, %s117
      %p129 = scmp.eq.s32.totalorder %s30, 1
      %p130 = por %p128, %p129
      %p132 = scmp.ne.s32.totalorder %s117, %s131
      %p133 = scmp.eq.s32.totalorder %s30, 0
      %p134 = por %p132, %p133
      %s136 = sadd.s32 %s135, 1
      %p139 = scmp.eq.s32.totalorder %s24, 1
      %p140 = scmp.ne.s32.totalorder %s135, %s137
      %p141 = scmp.eq.s32.totalorder %s24, 0
      %p142 = por %p140, %p141
      %p143 = scmp.ne.s32.totalorder %s135, %s137
      %p144 = scmp.eq.s32.totalorder %s29, 1
      %p145 = por %p143, %p144
      %p146 = scmp.ne.s32.totalorder %s137, %s138
      %p147 = scmp.eq.s32.totalorder %s29, 0
      %p148 = por %p146, %p147
      %p149 = scmp.ne.s32.totalorder %s137, %s138
      %p150 = scmp.eq.s32.totalorder %s30, 1
      %p151 = por %p149, %p150
      %p153 = scmp.ne.s32.totalorder %s138, %s152
      %p154 = scmp.eq.s32.totalorder %s30, 0
      %p155 = por %p153, %p154
      %s156 = ssub.s32 %s31, %s43
      %s157 = ssub.s32 %s32, %s39
      %s158 = sor.u32 %s156, %s157
      %p159 = scmp.eq.s32.totalorder %s158, 0
      %s161 = sadd.s32 %s160, 1
      %s162 = scalar_select %p159, %s160, %s161
      %p165 = pneg %p159
      %p166 = scmp.eq.s32.totalorder %s24, 1
      %p167 = por %p165, %p166
      %p168 = scmp.ne.s32.totalorder %s160, %s163
      %p169 = scmp.eq.s32.totalorder %s24, 0
      %p170 = por %p168, %p169
      %p171 = scmp.ne.s32.totalorder %s160, %s163
      %p172 = scmp.eq.s32.totalorder %s29, 1
      %p173 = por %p171, %p172
      %p174 = scmp.ne.s32.totalorder %s163, %s164
      %p175 = scmp.eq.s32.totalorder %s29, 0
      %p176 = por %p174, %p175
      %p177 = scmp.ne.s32.totalorder %s163, %s164
      %p178 = scmp.eq.s32.totalorder %s30, 1
      %p179 = por %p177, %p178
      %p181 = scmp.ne.s32.totalorder %s164, %s180
      %p182 = scmp.eq.s32.totalorder %s30, 0
      %p183 = por %p181, %p182
      %s184 = ssub.s32 %s31, %s43
      %s185 = ssub.s32 %s32, %s39
      %s186 = sor.u32 %s184, %s185
      %p187 = scmp.eq.s32.totalorder %s186, 0
      %s189 = sadd.s32 %s188, 1
      %s190 = scalar_select %p187, %s188, %s189
      %p193 = pneg %p187
      %p194 = scmp.eq.s32.totalorder %s24, 1
      %p195 = por %p193, %p194
      %p196 = scmp.ne.s32.totalorder %s188, %s191
      %p197 = scmp.eq.s32.totalorder %s24, 0
      %p198 = por %p196, %p197
      %p199 = scmp.ne.s32.totalorder %s188, %s191
      %p200 = scmp.eq.s32.totalorder %s29, 1
      %p201 = por %p199, %p200
      %p202 = scmp.ne.s32.totalorder %s191, %s192
      %p203 = scmp.eq.s32.totalorder %s29, 0
      %p204 = por %p202, %p203
      %p205 = scmp.ne.s32.totalorder %s191, %s192
      %p206 = scmp.eq.s32.totalorder %s30, 1
      %p207 = por %p205, %p206
      %p209 = scmp.ne.s32.totalorder %s192, %s208
      %p210 = scmp.eq.s32.totalorder %s30, 0
      %p211 = por %p209, %p210
      %p212 = scmp.le.s32.totalorder 1, %s24
      %p213 = scmp.lt.s32.totalorder %s24, 3
      %p214 = pnand %p212, %p213
      %p215 = pneg %p214
      // Predicated region
      $region9: #{tpu_custom_call.1} parent=5 // pred_check
        _
      $region10: #{tpu_custom_call.1} parent=5 // pred_check_branch
        %217 = sbr.rel (%p214) target = $region12
      $region11: #{tpu_custom_call.1} parent=5 // pred_region
        %s218 = ssub.s32 %s24, 1
        // Predicated region
        $region13: #{tpu_custom_call.1} parent=11 // pred_check
          %p219 = pneg %p85
        $region14: #{tpu_custom_call.1} parent=11 // pred_check_branch
          %221 = sbr.rel (%p219) target = $region16
        $region15: #{tpu_custom_call.1} parent=11 // pred_region
          %223 = vsyncadd [#allocation6], 0
          %s225 = sshll.u32 %s1, 4
          %s226 = int_to_ptr.hbm [resolvable:$true] %s225
          %s227 = sshll.u32 [#allocation5], 4
          %s228 = int_to_ptr.vmem [resolvable:$true] %s227
          %230 = dma.hbm_to_vmem [thread:$0]  %s226, 16, %s228, [#allocation6]
        $region16: #{tpu_custom_call.1} parent=11 // pred_fallthru
          _
        // Predicated region
        $region17: #{tpu_custom_call.1} parent=11 // pred_check
          %p231 = pneg %p106
        $region18: #{tpu_custom_call.1} parent=11 // pred_check_branch
          %233 = sbr.rel (%p231) target = $region20
        $region19: #{tpu_custom_call.1} parent=11 // pred_region
          %235 = vsyncadd [#allocation6], 0
          %s236 = sshll.u32 %s2, 4
          %s237 = int_to_ptr.hbm [resolvable:$true] %s236
          %s238 = sshll.u32 [#allocation7], 4
          %s239 = int_to_ptr.vmem [resolvable:$true] %s238
          %244 = dma.hbm_to_vmem [thread:$0]  %s237, 512, %s239, [#allocation6], 64, 64, 4
        $region20: #{tpu_custom_call.1} parent=11 // pred_fallthru
          _
        // Predicated region
        $region21: #{tpu_custom_call.1} parent=11 // pred_check
          %p245 = pneg %p127
        $region22: #{tpu_custom_call.1} parent=11 // pred_check_branch
          %247 = sbr.rel (%p245) target = $region24
        $region23: #{tpu_custom_call.1} parent=11 // pred_region
          %249 = vsyncadd [#allocation9], 0
          %s250 = sshll.u32 %s3, 4
          %s251 = int_to_ptr.hbm [resolvable:$true] %s250
          %s252 = sshll.u32 [#allocation8], 4
          %s253 = int_to_ptr.vmem [resolvable:$true] %s252
          %258 = dma.hbm_to_vmem [thread:$0]  %s251, 512, %s253, [#allocation9], 64, 64, 4
        $region24: #{tpu_custom_call.1} parent=11 // pred_fallthru
          _
        // Predicated region
        $region25: #{tpu_custom_call.1} parent=11 // pred_check
          %p259 = pneg %p148
        $region26: #{tpu_custom_call.1} parent=11 // pred_check_branch
          %261 = sbr.rel (%p259) target = $region28
        $region27: #{tpu_custom_call.1} parent=11 // pred_region
          _
        $region28: #{tpu_custom_call.1} parent=11 // pred_fallthru
          _
      $region12: #{tpu_custom_call.1} parent=5 // pred_fallthru
        _
      %p262 = scmp.lt.s32.totalorder %s24, 2
      // Predicated region
      $region29: #{tpu_custom_call.1} parent=5 // pred_check
        %p263 = pneg %p262
      $region30: #{tpu_custom_call.1} parent=5 // pred_check_branch
        %265 = sbr.rel (%p263) target = $region32
      $region31: #{tpu_custom_call.1} parent=5 // pred_region
        // Predicated region
        $region33: #{tpu_custom_call.1} parent=31 // pred_check
          %p266 = pneg %p58
        $region34: #{tpu_custom_call.1} parent=31 // pred_check_branch
          %268 = sbr.rel (%p266) target = $region36
        $region35: #{tpu_custom_call.1} parent=31 // pred_region
          %s269 = sand.u32 %s48, 1
          %s270 = scalar_lea.sflag [#allocation3], %s269
          %s271 = sand.u32 %s48, 1
          %s272 = smul.addr %s271, 16
          %s273 = scalar_lea.vmem [#allocation2], %s272
          %s274 = smul.u32 2, %s32
          %276 = vsyncadd %s270, 0
          %s277 = smul.addr %s31, 2
          %s278 = sadd.s32 %s274, %s277
          %s279 = smul.addr %s278, 8
          %s280 = scalar_lea.hbm %s0, %s279
          %s281 = sshll.u32 %s280, 4
          %s282 = int_to_ptr.hbm [resolvable:$true] %s281
          %s283 = sshll.u32 %s273, 4
          %s284 = int_to_ptr.vmem [resolvable:$true] %s283
          %289 = dma.hbm_to_vmem [thread:$0]  %s282, 256, %s284, %s270, 128, 128, 8
        $region36: #{tpu_custom_call.1} parent=31 // pred_fallthru
          _
      $region32: #{tpu_custom_call.1} parent=5 // pred_fallthru
        _
      %p290 = scmp.le.s32.totalorder 1, %s24
      %p291 = scmp.lt.s32.totalorder %s24, 3
      %p292 = pnand %p290, %p291
      %p293 = pneg %p292
      // Predicated region
      $region37: #{tpu_custom_call.1} parent=5 // pred_check
        _
      $region38: #{tpu_custom_call.1} parent=5 // pred_check_branch
        %295 = sbr.rel (%p292) target = $region40
      $region39: #{tpu_custom_call.1} parent=5 // pred_region
        %s296 = ssub.s32 %s24, 1
        %s297 = sand.u32 %s51, 1
        %s298 = scalar_lea.sflag [#allocation3], %s297
        %s299 = sand.u32 %s51, 1
        %s300 = smul.addr %s299, 16
        %s301 = scalar_lea.vmem [#allocation2], %s300
        // Predicated region
        $region41: #{tpu_custom_call.1} parent=39 // pred_check
          %p302 = pneg %p64
        $region42: #{tpu_custom_call.1} parent=39 // pred_check_branch
          %304 = sbr.rel (%p302) target = $region44
        $region43: #{tpu_custom_call.1} parent=39 // pred_region
          %306 = dma.done %s298, 256
        $region44: #{tpu_custom_call.1} parent=39 // pred_fallthru
          _
        // Predicated region
        $region45: #{tpu_custom_call.1} parent=39 // pred_check
          %p307 = pneg %p85
        $region46: #{tpu_custom_call.1} parent=39 // pred_check_branch
          %309 = sbr.rel (%p307) target = $region48
        $region47: #{tpu_custom_call.1} parent=39 // pred_region
          %311 = dma.done [#allocation6], 16
        $region48: #{tpu_custom_call.1} parent=39 // pred_fallthru
          _
        // Predicated region
        $region49: #{tpu_custom_call.1} parent=39 // pred_check
          %p312 = pneg %p106
        $region50: #{tpu_custom_call.1} parent=39 // pred_check_branch
          %314 = sbr.rel (%p312) target = $region52
        $region51: #{tpu_custom_call.1} parent=39 // pred_region
          %316 = dma.done [#allocation6], 512
        $region52: #{tpu_custom_call.1} parent=39 // pred_fallthru
          _
        // Predicated region
        $region53: #{tpu_custom_call.1} parent=39 // pred_check
          %p317 = pneg %p127
        $region54: #{tpu_custom_call.1} parent=39 // pred_check_branch
          %319 = sbr.rel (%p317) target = $region56
        $region55: #{tpu_custom_call.1} parent=39 // pred_region
          %321 = dma.done [#allocation9], 512
        $region56: #{tpu_custom_call.1} parent=39 // pred_fallthru
          _
        %s322 = sand.u32 %s51, 1
        %s323 = scalar_lea.sflag [#allocation3], %s322
        %s324 = sand.u32 %s51, 1
        %s325 = smul.addr %s324, 16
        %s326 = scalar_lea.vmem [#allocation2], %s325
        %p327 = pneg %p64
        %p328 = pneg %p61
        %p329 = pneg %p85
        %p330 = pneg %p82
        %p331 = pneg %p106
        %p332 = pneg %p103
        %p333 = pneg %p127
        %p334 = pneg %p124
        %p335 = pneg %p148
        %p336 = pneg %p145
        %p337 = pneg %p176
        %p338 = pneg %p173
        %s339 = sand.u32 %s163, 1
        %s340 = scalar_lea.sflag [#allocation4], %s339
        %s341 = sand.u32 %s163, 1
        %s342 = smul.addr %s341, 8
        %s343 = scalar_lea.vmem [#allocation10], %s342
        %p344 = pneg %p204
        %p345 = pneg %p201
        %s346 = sand.u32 %s191, 1
        %s347 = scalar_lea.sflag [#allocation12], %s346
        %s348 = sand.u32 %s191, 1
        %s349 = smul.addr %s348, 8
        %s350 = scalar_lea.vmem [#allocation11], %s349
        %s351 = smul.u32 2, %s34
        %s352 = smul.u32 2, %s34
        %s353 = smul.u32 2, %s34
        %v355 = vld [vmem:[%s301] sm:$0xff]
        %v356 = vld [vmem:[%s301 + $0x8] sm:$0xff]
        %v357 = vld [vmem:[#allocation5] sm:$0x1]
        %v358 = vmul.f32 %v355, %v355
        %v359 = vmul.f32 %v356, %v356
        %vm360 = vcmask 523264
        %v361 = vsel %vm360, %v358, 0.0
        %362 = vadd.xlane.f32.xlu0 %v361
        %v363 = vpop.xlane.xlu0 %362
        %v364 = vsel %vm360, %v359, 0.0
        %365 = vadd.xlane.f32.xlu0 %v364
        %v366 = vpop.xlane.xlu0 %365
        %v367 = vrcp.pop 64.0
        %v368 = vmul.f32 64.0, %v367
        %v369 = vsub.f32 1.0, %v368
        %v370 = vmul.f32 %v367, %v369
        %v371 = vadd.f32 %v367, %v370
        %vm372 = vweird.f32 %v367
        %v373 = vsel %vm372, %v367, %v371
        %v374 = vmul.f32 %v363, %v373
        %v375 = vmul.f32 %v366, %v373
        %v376 = vadd.f32 %v374, 1.1920929e-07
        %v377 = vadd.f32 %v375, 1.1920929e-07
        %v378 = vrsqrt.pop %v376
        %v379 = vmul.f32 %v378, %v376
        %v380 = vmul.f32 %v379, %v378
        %v381 = vmul.f32 0.5, %v380
        %v382 = vsub.f32 1.5, %v381
        %v383 = vmul.f32 %v378, %v382
        %vm384 = vweird.f32 %v376
        %vm385 = vweird.f32 %v378
        %vm386 = vmor %vm384, %vm385
        %v387 = vsel %vm386, %v378, %v383
        %v388 = vrsqrt.pop %v377
        %v389 = vmul.f32 %v388, %v377
        %v390 = vmul.f32 %v389, %v388
        %v391 = vmul.f32 0.5, %v390
        %v392 = vsub.f32 1.5, %v391
        %v393 = vmul.f32 %v388, %v392
        %vm394 = vweird.f32 %v377
        %vm395 = vweird.f32 %v388
        %vm396 = vmor %vm394, %vm395
        %v397 = vsel %vm396, %v388, %v393
        %v398 = vmul.f32 %v355, %v387
        %v399 = vmul.f32 %v356, %v397
        %v401 = vperm.slane %v357, 0
        %v403 = vmul.f32 %v398, %v401
        %v404 = vmul.f32 %v399, %v401
        %v405 = vpack.c.bf16 %v404, %v403
        %v406 = vld [vmem:[#allocation7] sm:$0xf]
        %v407 = vld [vmem:[#allocation7 + $0x4] sm:$0xf]
        %v408 = vld [vmem:[#allocation7 + $0x8] sm:$0xf]
        %v409 = vld [vmem:[#allocation7 + $0xc] sm:$0xf]
        %v410 = vld [vmem:[#allocation7 + $0x10] sm:$0xf]
        %v411 = vld [vmem:[#allocation7 + $0x14] sm:$0xf]
        %v412 = vld [vmem:[#allocation7 + $0x18] sm:$0xf]
        %v413 = vld [vmem:[#allocation7 + $0x1c] sm:$0xf]
        %v422 = vunpack.c.l.b16 %v406
        %v423 = vunpack.c.l.b16 %v407
        %v424 = vunpack.c.l.b16 %v408
        %v425 = vunpack.c.l.b16 %v409
        %v426 = vunpack.c.l.b16 %v410
        %v427 = vunpack.c.l.b16 %v411
        %v428 = vunpack.c.l.b16 %v412
        %v429 = vunpack.c.l.b16 %v413
        %v430 = vpack.c.b16 %v423, %v422
        %v431 = vpack.c.b16 %v425, %v424
        %v432 = vpack.c.b16 %v427, %v426
        %v433 = vpack.c.b16 %v429, %v428
        %v439 = vsel %vm360, %v405, 0
        %441 = vmatpush.bf16.msra.mxu0 0
        %442 = vmatpush.bf16.msra.mxu0 0
        %443 = vmatpush.bf16.msra.mxu0 0
        %444 = vmatpush.bf16.msra.mxu0 0
        %445 = vmatpush.bf16.msra.mxu0 %v433
        %446 = vmatpush.bf16.msra.mxu0 %v432
        %447 = vmatpush.bf16.msra.mxu0 %v431
        %448 = vmatpush.bf16.msra.mxu0 %v430
        %449 = vmatmul.bf16.gmra.mxu0 %v439
        %v450 = vpop.f32.mrf.mxu0
        %v451 = vadd.f32 0.0, %v450
        %v452 = vpop.f32.mrf.mxu0
        %v453 = vadd.f32 0.0, %v452
        %454 = vdwg.mxu0
        %v455 = vld [vmem:[#allocation8] sm:$0xf]
        %v456 = vld [vmem:[#allocation8 + $0x4] sm:$0xf]
        %v457 = vld [vmem:[#allocation8 + $0x8] sm:$0xf]
        %v458 = vld [vmem:[#allocation8 + $0xc] sm:$0xf]
        %v459 = vld [vmem:[#allocation8 + $0x10] sm:$0xf]
        %v460 = vld [vmem:[#allocation8 + $0x14] sm:$0xf]
        %v461 = vld [vmem:[#allocation8 + $0x18] sm:$0xf]
        %v462 = vld [vmem:[#allocation8 + $0x1c] sm:$0xf]
        %v471 = vunpack.c.l.b16 %v455
        %v472 = vunpack.c.l.b16 %v456
        %v473 = vunpack.c.l.b16 %v457
        %v474 = vunpack.c.l.b16 %v458
        %v475 = vunpack.c.l.b16 %v459
        %v476 = vunpack.c.l.b16 %v460
        %v477 = vunpack.c.l.b16 %v461
        %v478 = vunpack.c.l.b16 %v462
        %v479 = vpack.c.b16 %v472, %v471
        %v480 = vpack.c.b16 %v474, %v473
        %v481 = vpack.c.b16 %v476, %v475
        %v482 = vpack.c.b16 %v478, %v477
        %487 = vmatpush.bf16.msra.mxu0 0
        %488 = vmatpush.bf16.msra.mxu0 0
        %489 = vmatpush.bf16.msra.mxu0 0
        %490 = vmatpush.bf16.msra.mxu0 0
        %491 = vmatpush.bf16.msra.mxu0 %v482
        %492 = vmatpush.bf16.msra.mxu0 %v481
        %493 = vmatpush.bf16.msra.mxu0 %v480
        %494 = vmatpush.bf16.msra.mxu0 %v479
        %495 = vmatmul.bf16.gmra.mxu0 %v439
        %v496 = vpop.f32.mrf.mxu0
        %v497 = vadd.f32 0.0, %v496
        %v498 = vpop.f32.mrf.mxu0
        %v499 = vadd.f32 0.0, %v498
        %500 = vdwg.mxu0
        %v501 = vld [vmem:[%s4] sm:$0x1]
        %v502 = vmul.f32 %v451, %v451
        %v503 = vmul.f32 %v453, %v453
        %vm504 = vcmask 130048
        %v505 = vsel %vm504, %v502, 0.0
        %506 = vadd.xlane.f32.xlu0 %v505
        %v507 = vpop.xlane.xlu0 %506
        %v508 = vsel %vm504, %v503, 0.0
        %509 = vadd.xlane.f32.xlu0 %v508
        %v510 = vpop.xlane.xlu0 %509
        %v511 = vrcp.pop 16.0
        %v512 = vmul.f32 16.0, %v511
        %v513 = vsub.f32 1.0, %v512
        %v514 = vmul.f32 %v511, %v513
        %v515 = vadd.f32 %v511, %v514
        %vm516 = vweird.f32 %v511
        %v517 = vsel %vm516, %v511, %v515
        %v518 = vmul.f32 %v507, %v517
        %v519 = vmul.f32 %v510, %v517
        %v520 = vadd.f32 %v518, 1.1920929e-07
        %v521 = vadd.f32 %v519, 1.1920929e-07
        %v522 = vrsqrt.pop %v520
        %v523 = vmul.f32 %v522, %v520
        %v524 = vmul.f32 %v523, %v522
        %v525 = vmul.f32 0.5, %v524
        %v526 = vsub.f32 1.5, %v525
        %v527 = vmul.f32 %v522, %v526
        %vm528 = vweird.f32 %v520
        %vm529 = vweird.f32 %v522
        %vm530 = vmor %vm528, %vm529
        %v531 = vsel %vm530, %v522, %v527
        %v532 = vrsqrt.pop %v521
        %v533 = vmul.f32 %v532, %v521
        %v534 = vmul.f32 %v533, %v532
        %v535 = vmul.f32 0.5, %v534
        %v536 = vsub.f32 1.5, %v535
        %v537 = vmul.f32 %v532, %v536
        %vm538 = vweird.f32 %v521
        %vm539 = vweird.f32 %v532
        %vm540 = vmor %vm538, %vm539
        %v541 = vsel %vm540, %v532, %v537
        %v542 = vmul.f32 %v451, %v531
        %v543 = vmul.f32 %v453, %v541
        %v545 = vperm.slane %v501, 0
        %v547 = vmul.f32 %v542, %v545
        %v548 = vmul.f32 %v543, %v545
        %v549 = vpack.c.bf16 %v547, %v547
        %v550 = vpack.c.bf16 %v548, %v548
        %553 = vrot.lane.b32.xlu0 %v502, 112
        %v554 = vpop.permute.xlu0 %553
        %555 = vrot.lane.b32.xlu0 %v503, 112
        %v556 = vpop.permute.xlu0 %555
        %v559 = vsel %vm504, %v554, 0.0
        %560 = vadd.xlane.f32.xlu0 %v559
        %v561 = vpop.xlane.xlu0 %560
        %v562 = vsel %vm504, %v556, 0.0
        %563 = vadd.xlane.f32.xlu0 %v562
        %v564 = vpop.xlane.xlu0 %563
        %v565 = vmul.f32 %v561, %v517
        %v566 = vmul.f32 %v564, %v517
        %v567 = vadd.f32 %v565, 1.1920929e-07
        %v568 = vadd.f32 %v566, 1.1920929e-07
        %v569 = vrsqrt.pop %v567
        %v570 = vmul.f32 %v569, %v567
        %v571 = vmul.f32 %v570, %v569
        %v572 = vmul.f32 0.5, %v571
        %v573 = vsub.f32 1.5, %v572
        %v574 = vmul.f32 %v569, %v573
        %vm575 = vweird.f32 %v567
        %vm576 = vweird.f32 %v569
        %vm577 = vmor %vm575, %vm576
        %v578 = vsel %vm577, %v569, %v574
        %v579 = vrsqrt.pop %v568
        %v580 = vmul.f32 %v579, %v568
        %v581 = vmul.f32 %v580, %v579
        %v582 = vmul.f32 0.5, %v581
        %v583 = vsub.f32 1.5, %v582
        %v584 = vmul.f32 %v579, %v583
        %vm585 = vweird.f32 %v568
        %vm586 = vweird.f32 %v579
        %vm587 = vmor %vm585, %vm586
        %v588 = vsel %vm587, %v579, %v584
        %v589 = vmul.f32 %v451, %v578
        %v590 = vmul.f32 %v453, %v588
        %591 = vrot.lane.b32.xlu0 %v545, 16
        %v592 = vpop.permute.xlu0 %591
        %v594 = vmul.f32 %v589, %v592
        %v595 = vmul.f32 %v590, %v592
        %v596 = vpack.c.bf16 %v594, %v594
        %v597 = vpack.c.bf16 %v595, %v595
        %598 = vrot.lane.b32.xlu0 %v502, 96
        %v599 = vpop.permute.xlu0 %598
        %600 = vrot.lane.b32.xlu0 %v503, 96
        %v601 = vpop.permute.xlu0 %600
        %v604 = vsel %vm504, %v599, 0.0
        %605 = vadd.xlane.f32.xlu0 %v604
        %v606 = vpop.xlane.xlu0 %605
        %v607 = vsel %vm504, %v601, 0.0
        %608 = vadd.xlane.f32.xlu0 %v607
        %v609 = vpop.xlane.xlu0 %608
        %v610 = vmul.f32 %v606, %v517
        %v611 = vmul.f32 %v609, %v517
        %v612 = vadd.f32 %v610, 1.1920929e-07
        %v613 = vadd.f32 %v611, 1.1920929e-07
        %v614 = vrsqrt.pop %v612
        %v615 = vmul.f32 %v614, %v612
        %v616 = vmul.f32 %v615, %v614
        %v617 = vmul.f32 0.5, %v616
        %v618 = vsub.f32 1.5, %v617
        %v619 = vmul.f32 %v614, %v618
        %vm620 = vweird.f32 %v612
        %vm621 = vweird.f32 %v614
        %vm622 = vmor %vm620, %vm621
        %v623 = vsel %vm622, %v614, %v619
        %v624 = vrsqrt.pop %v613
        %v625 = vmul.f32 %v624, %v613
        %v626 = vmul.f32 %v625, %v624
        %v627 = vmul.f32 0.5, %v626
        %v628 = vsub.f32 1.5, %v627
        %v629 = vmul.f32 %v624, %v628
        %vm630 = vweird.f32 %v613
        %vm631 = vweird.f32 %v624
        %vm632 = vmor %vm630, %vm631
        %v633 = vsel %vm632, %v624, %v629
        %v634 = vmul.f32 %v451, %v623
        %v635 = vmul.f32 %v453, %v633
        %636 = vrot.lane.b32.xlu0 %v545, 32
        %v637 = vpop.permute.xlu0 %636
        %v639 = vmul.f32 %v634, %v637
        %v640 = vmul.f32 %v635, %v637
        %v641 = vpack.c.bf16 %v639, %v639
        %v642 = vpack.c.bf16 %v640, %v640
        %643 = vrot.lane.b32.xlu0 %v502, 80
        %v644 = vpop.permute.xlu0 %643
        %645 = vrot.lane.b32.xlu0 %v503, 80
        %v646 = vpop.permute.xlu0 %645
        %v649 = vsel %vm504, %v644, 0.0
        %650 = vadd.xlane.f32.xlu0 %v649
        %v651 = vpop.xlane.xlu0 %650
        %v652 = vsel %vm504, %v646, 0.0
        %653 = vadd.xlane.f32.xlu0 %v652
        %v654 = vpop.xlane.xlu0 %653
        %v655 = vmul.f32 %v651, %v517
        %v656 = vmul.f32 %v654, %v517
        %v657 = vadd.f32 %v655, 1.1920929e-07
        %v658 = vadd.f32 %v656, 1.1920929e-07
        %v659 = vrsqrt.pop %v657
        %v660 = vmul.f32 %v659, %v657
        %v661 = vmul.f32 %v660, %v659
        %v662 = vmul.f32 0.5, %v661
        %v663 = vsub.f32 1.5, %v662
        %v664 = vmul.f32 %v659, %v663
        %vm665 = vweird.f32 %v657
        %vm666 = vweird.f32 %v659
        %vm667 = vmor %vm665, %vm666
        %v668 = vsel %vm667, %v659, %v664
        %v669 = vrsqrt.pop %v658
        %v670 = vmul.f32 %v669, %v658
        %v671 = vmul.f32 %v670, %v669
        %v672 = vmul.f32 0.5, %v671
        %v673 = vsub.f32 1.5, %v672
        %v674 = vmul.f32 %v669, %v673
        %vm675 = vweird.f32 %v658
        %vm676 = vweird.f32 %v669
        %vm677 = vmor %vm675, %vm676
        %v678 = vsel %vm677, %v669, %v674
        %v679 = vmul.f32 %v451, %v668
        %v680 = vmul.f32 %v453, %v678
        %681 = vrot.lane.b32.xlu0 %v545, 48
        %v682 = vpop.permute.xlu0 %681
        %v684 = vmul.f32 %v679, %v682
        %v685 = vmul.f32 %v680, %v682
        %v686 = vpack.c.bf16 %v684, %v684
        %v687 = vpack.c.bf16 %v685, %v685
        %v690 = vunpack.c.l.b16 %v549
        %v691 = vunpack.c.l.b16 %v550
        %v692 = vpack.c.b16 %v691, %v690
        %v695 = vunpack.c.l.b16 %v596
        %v696 = vunpack.c.l.b16 %v597
        %v697 = vpack.c.b16 %v696, %v695
        %v700 = vunpack.c.l.b16 %v641
        %v701 = vunpack.c.l.b16 %v642
        %v702 = vpack.c.b16 %v701, %v700
        %v705 = vunpack.c.l.b16 %v686
        %v706 = vunpack.c.l.b16 %v687
        %v707 = vpack.c.b16 %v706, %v705
        %v710 = vsel %vm504, %v692, %v697
        %vm711 = vcmask 261120
        %v713 = vsel %vm711, %v710, %v702
        %vm714 = vcmask 392192
        %v716 = vsel %vm714, %v713, %v707
        %v718 = vunpack.c.l.b16 %v716
        %v719 = vunpack.c.h.b16 %v716
        %v720 = vpack.c.b16 %v718, %v718
        %v721 = vpack.c.b16 %v719, %v719
        %vm724 = vcmask 519168
        %725 = vst.msk [vmem:[%s343] sm:$0xf] %vm724, %v720
        %726 = vst.msk [vmem:[%s343 + $0x4] sm:$0xf] %vm724, %v721
        %v727 = vpack.c.bf16 %v497, %v497
        %v728 = vpack.c.bf16 %v499, %v499
        %729 = vst.msk [vmem:[%s350] sm:$0xf] %vm724, %v727
        %730 = vst.msk [vmem:[%s350 + $0x4] sm:$0xf] %vm724, %v728
        %s731 = sand.u32 %s163, 1
        %s732 = scalar_lea.sflag [#allocation4], %s731
        %s733 = sand.u32 %s163, 1
        %s734 = smul.addr %s733, 8
        %s735 = scalar_lea.vmem [#allocation10], %s734
        %s736 = sand.u32 %s191, 1
        %s737 = scalar_lea.sflag [#allocation12], %s736
        %s738 = sand.u32 %s191, 1
        %s739 = smul.addr %s738, 8
        %s740 = scalar_lea.vmem [#allocation11], %s739
        // Predicated region
        $region57: #{tpu_custom_call.1} parent=39 // pred_check
          %p741 = pneg %p173
        $region58: #{tpu_custom_call.1} parent=39 // pred_check_branch
          %743 = sbr.rel (%p741) target = $region60
        $region59: #{tpu_custom_call.1} parent=39 // pred_region
          %s744 = smul.u32 2, %s34
          %746 = vsyncadd %s732, 0
          %s747 = smul.addr %s33, 2
          %s748 = sadd.s32 %s744, %s747
          %s749 = smul.addr %s748, 4
          %s750 = scalar_lea.hbm %s5, %s749
          %s751 = sshll.u32 %s735, 4
          %s752 = int_to_ptr.vmem [resolvable:$true] %s751
          %s753 = sshll.u32 %s750, 4
          %s754 = int_to_ptr.hbm [resolvable:$true] %s753
          %759 = dma.vmem_to_hbm [thread:$0]  %s752, 128, %s754, %s732, 64, 64, 4
        $region60: #{tpu_custom_call.1} parent=39 // pred_fallthru
          _
        // Predicated region
        $region61: #{tpu_custom_call.1} parent=39 // pred_check
          %p760 = pneg %p201
        $region62: #{tpu_custom_call.1} parent=39 // pred_check_branch
          %762 = sbr.rel (%p760) target = $region64
        $region63: #{tpu_custom_call.1} parent=39 // pred_region
          %s763 = smul.u32 2, %s34
          %765 = vsyncadd %s737, 0
          %s766 = smul.addr %s33, 2
          %s767 = sadd.s32 %s763, %s766
          %s768 = smul.addr %s767, 4
          %s769 = scalar_lea.hbm %s6, %s768
          %s770 = sshll.u32 %s740, 4
          %s771 = int_to_ptr.vmem [resolvable:$true] %s770
          %s772 = sshll.u32 %s769, 4
          %s773 = int_to_ptr.hbm [resolvable:$true] %s772
          %778 = dma.vmem_to_hbm [thread:$0]  %s771, 128, %s773, %s737, 64, 64, 4
        $region64: #{tpu_custom_call.1} parent=39 // pred_fallthru
          _
      $region40: #{tpu_custom_call.1} parent=5 // pred_fallthru
        _
      %p779 = scmp.le.s32.totalorder 2, %s24
      // Predicated region
      $region65: #{tpu_custom_call.1} parent=5 // pred_check
        %p780 = pneg %p779
      $region66: #{tpu_custom_call.1} parent=5 // pred_check_branch
        %782 = sbr.rel (%p780) target = $region68
      $region67: #{tpu_custom_call.1} parent=5 // pred_region
        %s783 = ssub.s32 %s24, 2
        // Predicated region
        $region69: #{tpu_custom_call.1} parent=67 // pred_check
          %p784 = pneg %p179
        $region70: #{tpu_custom_call.1} parent=67 // pred_check_branch
          %786 = sbr.rel (%p784) target = $region72
        $region71: #{tpu_custom_call.1} parent=67 // pred_region
          %s787 = sand.u32 %s164, 1
          %s788 = scalar_lea.sflag [#allocation4], %s787
          %s789 = sand.u32 %s164, 1
          %s790 = smul.addr %s789, 8
          %s791 = scalar_lea.vmem [#allocation10], %s790
          %793 = dma.done %s788, 128
        $region72: #{tpu_custom_call.1} parent=67 // pred_fallthru
          _
        // Predicated region
        $region73: #{tpu_custom_call.1} parent=67 // pred_check
          %p794 = pneg %p207
        $region74: #{tpu_custom_call.1} parent=67 // pred_check_branch
          %796 = sbr.rel (%p794) target = $region76
        $region75: #{tpu_custom_call.1} parent=67 // pred_region
          %s797 = sand.u32 %s192, 1
          %s798 = scalar_lea.sflag [#allocation12], %s797
          %s799 = sand.u32 %s192, 1
          %s800 = smul.addr %s799, 8
          %s801 = scalar_lea.vmem [#allocation11], %s800
          %803 = dma.done %s798, 128
        $region76: #{tpu_custom_call.1} parent=67 // pred_fallthru
          _
      $region68: #{tpu_custom_call.1} parent=5 // pred_fallthru
        _
    $region6: #{tpu_custom_call.1} parent=1 // loop_footer
      %s28 = sadd.s32 1, %s24
    $region7: #{tpu_custom_call.1} parent=1 // loop_footer_branch
      %23 = sbr.rel target = $region3
    $region8: #{tpu_custom_call.1} parent=1 // loop_exit
      _
    %804 = vsyncpa [#allocation3], 1
    %s805 = scalar_lea.sflag [#allocation3], 1
    %806 = vsyncpa %s805, 1
    %807 = vsyncpa [#allocation6], 1
    %808 = vsyncpa [#allocation9], 1
    %809 = vsyncpa [#allocation4], 1
    %s810 = scalar_lea.sflag [#allocation4], 1
    %811 = vsyncpa %s810, 1
    %812 = vsyncpa [#allocation12], 1
    %s813 = scalar_lea.sflag [#allocation12], 1
    %814 = vsyncpa %s813, 1

// kernel: tpu_custom_call.1
$region0: #{tpu_custom_call.1}
  #allocation0 [shape = 'u32[]', space=smem, size = 0x4, offset = 0x4, fixed_abs, tag = 'smem constant byte address 0x4 - core index']
  #allocation1 [shape = 'u32[72,128]{1,0:T(1,128)}', space=vmem, size = 0x9000, scoped, tag = 'internal scratch']
  %s0 = inlined_call_operand.hbm [shape: f32[2,16,64], index: 0, kind: input, shape index: {}]
  %s1 = inlined_call_operand.hbm [shape: f32[1,64], index: 1, kind: input, shape index: {}]
  %s2 = inlined_call_operand.hbm [shape: bf16[64,64], index: 2, kind: input, shape index: {}]
  %s3 = inlined_call_operand.hbm [shape: bf16[64,64], index: 3, kind: input, shape index: {}]
  %s4 = inlined_call_operand.vmem [shape: f32[1,16], index: 4, kind: input, shape index: {}]
  %s5 = inlined_call_operand.hbm [shape: bf16[2,16,64], index: 5, kind: output, shape index: {0}]
  %s6 = inlined_call_operand.hbm [shape: bf16[2,16,64], index: 6, kind: output, shape index: {1}]
  %7 = xla_tuple %s5, %s6
  %s8 = sld [smem:[#allocation0]]
  $region77: #{tpu_custom_call.1} parent=0
    _
  %s10 = ssub.s32 1, %s8
  %s11 = scalar_select 0, %s10, %s8
  $region1: #{tpu_custom_call.1} parent=0
    #allocation2 [shape = 'u8[16384]{0}', space=vmem, size = 0x4000, scoped, tag = 'input window, operand 0']
    #allocation3 [shape = 's32[2]{0}', space=sflag, size = 0x8, scoped, tag = 'scoped memory for tpu_custom_call.1']
    #allocation4 [shape = 's32[2]{0}', space=sflag, size = 0x8, scoped, tag = 'scoped memory for tpu_custom_call.1']
    #allocation5 [shape = 'u8[512]{0}', space=vmem, size = 0x400, scoped, tag = 'input window, operand 1, single buffered']
    #allocation6 [shape = 's32[1]{0}', space=sflag, size = 0x4, scoped, tag = 'scoped memory for tpu_custom_call.1']
    #allocation7 [shape = 'u8[16384]{0}', space=vmem, size = 0x4000, scoped, tag = 'input window, operand 2, single buffered']
    #allocation8 [shape = 'u8[16384]{0}', space=vmem, size = 0x4000, scoped, tag = 'input window, operand 3, single buffered']
    #allocation9 [shape = 's32[1]{0}', space=sflag, size = 0x4, scoped, tag = 'scoped memory for tpu_custom_call.1']
    #allocation10 [shape = 'u8[8192]{0}', space=vmem, size = 0x2000, scoped, tag = 'output window, operand 0']
    #allocation11 [shape = 'u8[8192]{0}', space=vmem, size = 0x2000, scoped, tag = 'output window, operand 1']
    #allocation12 [shape = 's32[2]{0}', space=sflag, size = 0x8, scoped, tag = 'scoped memory for tpu_custom_call.1']
    %12 = vsyncpa [#allocation3], 0
    %s13 = scalar_lea.sflag [#allocation3], 1
    %14 = vsyncpa %s13, 0
    %15 = vsyncpa [#allocation6], 0
    %16 = vsyncpa [#allocation9], 0
    %17 = vsyncpa [#allocation4], 0
    %s18 = scalar_lea.sflag [#allocation4], 1
    %19 = vsyncpa %s18, 0
    %20 = vsyncpa [#allocation12], 0
    %s21 = scalar_lea.sflag [#allocation12], 1
    %22 = vsyncpa %s21, 0
    loop: start=0, step=1, limit=4
    $region2: #{tpu_custom_call.1} parent=1 // loop_pre_header
      _
    $region3: #{tpu_custom_call.1} parent=1 // loop_header
      %s24 = sphi 0, %s28
      %p25 = scmp.ge.s32.totalorder %s24, 4
      %s31 = sphi 0, %s43
      %s32 = sphi 0, %s39
      %s33 = sphi 0, %s31
      %s34 = sphi 0, %s32
      %s35 = sphi 0, %s33
      %s36 = sphi 0, %s34
      %s48 = sphi 0, %s50
      %s51 = sphi 0, %s48
      %s52 = sphi 0, %s51
      %s68 = sphi 0, %s52
      %s72 = sphi 0, %s72
      %s74 = sphi 0, %s72
      %s75 = sphi 0, %s74
      %s89 = sphi 0, %s75
      %s93 = sphi 0, %s93
      %s95 = sphi 0, %s93
      %s96 = sphi 0, %s95
      %s110 = sphi 0, %s96
      %s114 = sphi 0, %s114
      %s116 = sphi 0, %s114
      %s117 = sphi 0, %s116
      %s131 = sphi 0, %s117
      %s135 = sphi 0, %s135
      %s137 = sphi 0, %s135
      %s138 = sphi 0, %s137
      %s152 = sphi 0, %s138
      %s160 = sphi 0, %s162
      %s163 = sphi 0, %s160
      %s164 = sphi 0, %s163
      %s180 = sphi 0, %s164
      %s188 = sphi 0, %s190
      %s191 = sphi 0, %s188
      %s192 = sphi 0, %s191
      %s208 = sphi 0, %s192
    $region4: #{tpu_custom_call.1} parent=1 // loop_header_branch
      %27 = sbr.rel (%p25) target = $region8
    $region5: #{tpu_custom_call.1} parent=1 // loop_body
      %s29 = ssub.s32 %s24, 1
      %s30 = ssub.s32 %s24, 2
      %s37 = sadd.s32 1, %s32
      %p38 = scmp.ge.s32.totalorder %s37, 1
      %s39 = scalar_select %p38, 0, %s37
      %s40 = sadd.s32 1, %s31
      %s41 = scalar_select %p38, %s40, %s31
      %p42 = scmp.ge.s32.totalorder %s41, 2
      %s43 = scalar_select %p42, 0, %s41
      %s44 = ssub.s32 %s31, %s43
      %s45 = ssub.s32 %s32, %s39
      %s46 = sor.u32 %s44, %s45
      %p47 = scmp.eq.s32.totalorder %s46, 0
      %s49 = sadd.s32 %s48, 1
      %s50 = scalar_select %p47, %s48, %s49
      %p53 = pneg %p47
      %p54 = scmp.eq.s32.totalorder %s24, 1
      %p55 = por %p53, %p54
      %p56 = scmp.ne.s32.totalorder %s48, %s51
      %p57 = scmp.eq.s32.totalorder %s24, 0
      %p58 = por %p56, %p57
      %p59 = scmp.ne.s32.totalorder %s48, %s51
      %p60 = scmp.eq.s32.totalorder %s29, 1
      %p61 = por %p59, %p60
      %p62 = scmp.ne.s32.totalorder %s51, %s52
      %p63 = scmp.eq.s32.totalorder %s29, 0
      %p64 = por %p62, %p63
      %p65 = scmp.ne.s32.totalorder %s51, %s52
      %p66 = scmp.eq.s32.totalorder %s30, 1
      %p67 = por %p65, %p66
      %p69 = scmp.ne.s32.totalorder %s52, %s68
      %p70 = scmp.eq.s32.totalorder %s30, 0
      %p71 = por %p69, %p70
      %s73 = sadd.s32 %s72, 1
      %p76 = scmp.eq.s32.totalorder %s24, 1
      %p77 = scmp.ne.s32.totalorder %s72, %s74
      %p78 = scmp.eq.s32.totalorder %s24, 0
      %p79 = por %p77, %p78
      %p80 = scmp.ne.s32.totalorder %s72, %s74
      %p81 = scmp.eq.s32.totalorder %s29, 1
      %p82 = por %p80, %p81
      %p83 = scmp.ne.s32.totalorder %s74, %s75
      %p84 = scmp.eq.s32.totalorder %s29, 0
      %p85 = por %p83, %p84
      %p86 = scmp.ne.s32.totalorder %s74, %s75
      %p87 = scmp.eq.s32.totalorder %s30, 1
      %p88 = por %p86, %p87
      %p90 = scmp.ne.s32.totalorder %s75, %s89
      %p91 = scmp.eq.s32.totalorder %s30, 0
      %p92 = por %p90, %p91
      %s94 = sadd.s32 %s93, 1
      %p97 = scmp.eq.s32.totalorder %s24, 1
      %p98 = scmp.ne.s32.totalorder %s93, %s95
      %p99 = scmp.eq.s32.totalorder %s24, 0
      %p100 = por %p98, %p99
      %p101 = scmp.ne.s32.totalorder %s93, %s95
      %p102 = scmp.eq.s32.totalorder %s29, 1
      %p103 = por %p101, %p102
      %p104 = scmp.ne.s32.totalorder %s95, %s96
      %p105 = scmp.eq.s32.totalorder %s29, 0
      %p106 = por %p104, %p105
      %p107 = scmp.ne.s32.totalorder %s95, %s96
      %p108 = scmp.eq.s32.totalorder %s30, 1
      %p109 = por %p107, %p108
      %p111 = scmp.ne.s32.totalorder %s96, %s110
      %p112 = scmp.eq.s32.totalorder %s30, 0
      %p113 = por %p111, %p112
      %s115 = sadd.s32 %s114, 1
      %p118 = scmp.eq.s32.totalorder %s24, 1
      %p119 = scmp.ne.s32.totalorder %s114, %s116
      %p120 = scmp.eq.s32.totalorder %s24, 0
      %p121 = por %p119, %p120
      %p122 = scmp.ne.s32.totalorder %s114, %s116
      %p123 = scmp.eq.s32.totalorder %s29, 1
      %p124 = por %p122, %p123
      %p125 = scmp.ne.s32.totalorder %s116, %s117
      %p126 = scmp.eq.s32.totalorder %s29, 0
      %p127 = por %p125, %p126
      %p128 = scmp.ne.s32.totalorder %s116, %s117
      %p129 = scmp.eq.s32.totalorder %s30, 1
      %p130 = por %p128, %p129
      %p132 = scmp.ne.s32.totalorder %s117, %s131
      %p133 = scmp.eq.s32.totalorder %s30, 0
      %p134 = por %p132, %p133
      %s136 = sadd.s32 %s135, 1
      %p139 = scmp.eq.s32.totalorder %s24, 1
      %p140 = scmp.ne.s32.totalorder %s135, %s137
      %p141 = scmp.eq.s32.totalorder %s24, 0
      %p142 = por %p140, %p141
      %p143 = scmp.ne.s32.totalorder %s135, %s137
      %p144 = scmp.eq.s32.totalorder %s29, 1
      %p145 = por %p143, %p144
      %p146 = scmp.ne.s32.totalorder %s137, %s138
      %p147 = scmp.eq.s32.totalorder %s29, 0
      %p148 = por %p146, %p147
      %p149 = scmp.ne.s32.totalorder %s137, %s138
      %p150 = scmp.eq.s32.totalorder %s30, 1
      %p151 = por %p149, %p150
      %p153 = scmp.ne.s32.totalorder %s138, %s152
      %p154 = scmp.eq.s32.totalorder %s30, 0
      %p155 = por %p153, %p154
      %s156 = ssub.s32 %s31, %s43
      %s157 = ssub.s32 %s32, %s39
      %s158 = sor.u32 %s156, %s157
      %p159 = scmp.eq.s32.totalorder %s158, 0
      %s161 = sadd.s32 %s160, 1
      %s162 = scalar_select %p159, %s160, %s161
      %p165 = pneg %p159
      %p166 = scmp.eq.s32.totalorder %s24, 1
      %p167 = por %p165, %p166
      %p168 = scmp.ne.s32.totalorder %s160, %s163
      %p169 = scmp.eq.s32.totalorder %s24, 0
      %p170 = por %p168, %p169
      %p171 = scmp.ne.s32.totalorder %s160, %s163
      %p172 = scmp.eq.s32.totalorder %s29, 1
      %p173 = por %p171, %p172
      %p174 = scmp.ne.s32.totalorder %s163, %s164
      %p175 = scmp.eq.s32.totalorder %s29, 0
      %p176 = por %p174, %p175
      %p177 = scmp.ne.s32.totalorder %s163, %s164
      %p178 = scmp.eq.s32.totalorder %s30, 1
      %p179 = por %p177, %p178
      %p181 = scmp.ne.s32.totalorder %s164, %s180
      %p182 = scmp.eq.s32.totalorder %s30, 0
      %p183 = por %p181, %p182
      %s184 = ssub.s32 %s31, %s43
      %s185 = ssub.s32 %s32, %s39
      %s186 = sor.u32 %s184, %s185
      %p187 = scmp.eq.s32.totalorder %s186, 0
      %s189 = sadd.s32 %s188, 1
      %s190 = scalar_select %p187, %s188, %s189
      %p193 = pneg %p187
      %p194 = scmp.eq.s32.totalorder %s24, 1
      %p195 = por %p193, %p194
      %p196 = scmp.ne.s32.totalorder %s188, %s191
      %p197 = scmp.eq.s32.totalorder %s24, 0
      %p198 = por %p196, %p197
      %p199 = scmp.ne.s32.totalorder %s188, %s191
      %p200 = scmp.eq.s32.totalorder %s29, 1
      %p201 = por %p199, %p200
      %p202 = scmp.ne.s32.totalorder %s191, %s192
      %p203 = scmp.eq.s32.totalorder %s29, 0
      %p204 = por %p202, %p203
      %p205 = scmp.ne.s32.totalorder %s191, %s192
      %p206 = scmp.eq.s32.totalorder %s30, 1
      %p207 = por %p205, %p206
      %p209 = scmp.ne.s32.totalorder %s192, %s208
      %p210 = scmp.eq.s32.totalorder %s30, 0
      %p211 = por %p209, %p210
      %p212 = scmp.le.s32.totalorder 1, %s24
      %p213 = scmp.lt.s32.totalorder %s24, 3
      %p214 = pnand %p212, %p213
      %p215 = pneg %p214
      // Predicated region
      $region9: #{tpu_custom_call.1} parent=5 // pred_check
        _
      $region10: #{tpu_custom_call.1} parent=5 // pred_check_branch
        %217 = sbr.rel (%p214) target = $region12
      $region11: #{tpu_custom_call.1} parent=5 // pred_region
        %s218 = ssub.s32 %s24, 1
        // Predicated region
        $region13: #{tpu_custom_call.1} parent=11 // pred_check
          %p219 = pneg %p85
        $region14: #{tpu_custom_call.1} parent=11 // pred_check_branch
          %221 = sbr.rel (%p219) target = $region16
        $region15: #{tpu_custom_call.1} parent=11 // pred_region
          %223 = vsyncadd [#allocation6], 0
          %s225 = sshll.u32 %s1, 4
          %s226 = int_to_ptr.hbm [resolvable:$true] %s225
          %s227 = sshll.u32 [#allocation5], 4
          %s228 = int_to_ptr.vmem [resolvable:$true] %s227
          %230 = dma.hbm_to_vmem [thread:$0]  %s226, 16, %s228, [#allocation6]
        $region16: #{tpu_custom_call.1} parent=11 // pred_fallthru
          _
        // Predicated region
        $region17: #{tpu_custom_call.1} parent=11 // pred_check
          %p231 = pneg %p106
        $region18: #{tpu_custom_call.1} parent=11 // pred_check_branch
          %233 = sbr.rel (%p231) target = $region20
        $region19: #{tpu_custom_call.1} parent=11 // pred_region
          %235 = vsyncadd [#allocation6], 0
          %s236 = sshll.u32 %s2, 4
          %s237 = int_to_ptr.hbm [resolvable:$true] %s236
          %s238 = sshll.u32 [#allocation7], 4
          %s239 = int_to_ptr.vmem [resolvable:$true] %s238
          %244 = dma.hbm_to_vmem [thread:$0]  %s237, 512, %s239, [#allocation6], 64, 64, 4
        $region20: #{tpu_custom_call.1} parent=11 // pred_fallthru
          _
        // Predicated region
        $region21: #{tpu_custom_call.1} parent=11 // pred_check
          %p245 = pneg %p127
        $region22: #{tpu_custom_call.1} parent=11 // pred_check_branch
          %247 = sbr.rel (%p245) target = $region24
        $region23: #{tpu_custom_call.1} parent=11 // pred_region
          %249 = vsyncadd [#allocation9], 0
          %s250 = sshll.u32 %s3, 4
          %s251 = int_to_ptr.hbm [resolvable:$true] %s250
          %s252 = sshll.u32 [#allocation8], 4
          %s253 = int_to_ptr.vmem [resolvable:$true] %s252
          %258 = dma.hbm_to_vmem [thread:$0]  %s251, 512, %s253, [#allocation9], 64, 64, 4
        $region24: #{tpu_custom_call.1} parent=11 // pred_fallthru
          _
        // Predicated region
        $region25: #{tpu_custom_call.1} parent=11 // pred_check
          %p259 = pneg %p148
        $region26: #{tpu_custom_call.1} parent=11 // pred_check_branch
          %261 = sbr.rel (%p259) target = $region28
        $region27: #{tpu_custom_call.1} parent=11 // pred_region
          _
        $region28: #{tpu_custom_call.1} parent=11 // pred_fallthru
          _
      $region12: #{tpu_custom_call.1} parent=5 // pred_fallthru
        _
      %p262 = scmp.lt.s32.totalorder %s24, 2
      // Predicated region
      $region29: #{tpu_custom_call.1} parent=5 // pred_check
        %p263 = pneg %p262
      $region30: #{tpu_custom_call.1} parent=5 // pred_check_branch
        %265 = sbr.rel (%p263) target = $region32
      $region31: #{tpu_custom_call.1} parent=5 // pred_region
        // Predicated region
        $region33: #{tpu_custom_call.1} parent=31 // pred_check
          %p266 = pneg %p58
        $region34: #{tpu_custom_call.1} parent=31 // pred_check_branch
          %268 = sbr.rel (%p266) target = $region36
        $region35: #{tpu_custom_call.1} parent=31 // pred_region
          %s269 = sand.u32 %s48, 1
          %s270 = scalar_lea.sflag [#allocation3], %s269
          %s271 = sand.u32 %s48, 1
          %s272 = smul.addr %s271, 16
          %s273 = scalar_lea.vmem [#allocation2], %s272
          %s274 = smul.u32 2, %s32
          %276 = vsyncadd %s270, 0
          %s277 = smul.addr %s31, 2
          %s278 = sadd.s32 %s274, %s277
          %s279 = smul.addr %s278, 8
          %s280 = scalar_lea.hbm %s0, %s279
          %s281 = sshll.u32 %s280, 4
          %s282 = int_to_ptr.hbm [resolvable:$true] %s281
          %s283 = sshll.u32 %s273, 4
          %s284 = int_to_ptr.vmem [resolvable:$true] %s283
          %289 = dma.hbm_to_vmem [thread:$0]  %s282, 256, %s284, %s270, 128, 128, 8
        $region36: #{tpu_custom_call.1} parent=31 // pred_fallthru
          _
      $region32: #{tpu_custom_call.1} parent=5 // pred_fallthru
        _
      %p290 = scmp.le.s32.totalorder 1, %s24
      %p291 = scmp.lt.s32.totalorder %s24, 3
      %p292 = pnand %p290, %p291
      %p293 = pneg %p292
      // Predicated region
      $region37: #{tpu_custom_call.1} parent=5 // pred_check
        _
      $region38: #{tpu_custom_call.1} parent=5 // pred_check_branch
        %295 = sbr.rel (%p292) target = $region40
      $region39: #{tpu_custom_call.1} parent=5 // pred_region
        %s296 = ssub.s32 %s24, 1
        %s297 = sand.u32 %s51, 1
        %s298 = scalar_lea.sflag [#allocation3], %s297
        %s299 = sand.u32 %s51, 1
        %s300 = smul.addr %s299, 16
        %s301 = scalar_lea.vmem [#allocation2], %s300
        // Predicated region
        $region41: #{tpu_custom_call.1} parent=39 // pred_check
          %p302 = pneg %p64
        $region42: #{tpu_custom_call.1} parent=39 // pred_check_branch
          %304 = sbr.rel (%p302) target = $region44
        $region43: #{tpu_custom_call.1} parent=39 // pred_region
          %306 = dma.done %s298, 256
        $region44: #{tpu_custom_call.1} parent=39 // pred_fallthru
          _
        // Predicated region
        $region45: #{tpu_custom_call.1} parent=39 // pred_check
          %p307 = pneg %p85
        $region46: #{tpu_custom_call.1} parent=39 // pred_check_branch
          %309 = sbr.rel (%p307) target = $region48
        $region47: #{tpu_custom_call.1} parent=39 // pred_region
          %311 = dma.done [#allocation6], 16
        $region48: #{tpu_custom_call.1} parent=39 // pred_fallthru
          _
        // Predicated region
        $region49: #{tpu_custom_call.1} parent=39 // pred_check
          %p312 = pneg %p106
        $region50: #{tpu_custom_call.1} parent=39 // pred_check_branch
          %314 = sbr.rel (%p312) target = $region52
        $region51: #{tpu_custom_call.1} parent=39 // pred_region
          %316 = dma.done [#allocation6], 512
        $region52: #{tpu_custom_call.1} parent=39 // pred_fallthru
          _
        // Predicated region
        $region53: #{tpu_custom_call.1} parent=39 // pred_check
          %p317 = pneg %p127
        $region54: #{tpu_custom_call.1} parent=39 // pred_check_branch
          %319 = sbr.rel (%p317) target = $region56
        $region55: #{tpu_custom_call.1} parent=39 // pred_region
          %321 = dma.done [#allocation9], 512
        $region56: #{tpu_custom_call.1} parent=39 // pred_fallthru
          _
        %s322 = sand.u32 %s51, 1
        %s323 = scalar_lea.sflag [#allocation3], %s322
        %s324 = sand.u32 %s51, 1
        %s325 = smul.addr %s324, 16
        %s326 = scalar_lea.vmem [#allocation2], %s325
        %p327 = pneg %p64
        %p328 = pneg %p61
        %p329 = pneg %p85
        %p330 = pneg %p82
        %p331 = pneg %p106
        %p332 = pneg %p103
        %p333 = pneg %p127
        %p334 = pneg %p124
        %p335 = pneg %p148
        %p336 = pneg %p145
        %p337 = pneg %p176
        %p338 = pneg %p173
        %s339 = sand.u32 %s163, 1
        %s340 = scalar_lea.sflag [#allocation4], %s339
        %s341 = sand.u32 %s163, 1
        %s342 = smul.addr %s341, 8
        %s343 = scalar_lea.vmem [#allocation10], %s342
        %p344 = pneg %p204
        %p345 = pneg %p201
        %s346 = sand.u32 %s191, 1
        %s347 = scalar_lea.sflag [#allocation12], %s346
        %s348 = sand.u32 %s191, 1
        %s349 = smul.addr %s348, 8
        %s350 = scalar_lea.vmem [#allocation11], %s349
        %s351 = smul.u32 2, %s34
        %s352 = smul.u32 2, %s34
        %s353 = smul.u32 2, %s34
        %v355 = vld [vmem:[%s301] sm:$0xff]
        %v356 = vld [vmem:[%s301 + $0x8] sm:$0xff]
        %v357 = vld [vmem:[#allocation5] sm:$0x1]
        %v358 = vmul.f32 %v355, %v355
        %v359 = vmul.f32 %v356, %v356
        %vm360 = vcmask 523264
        %v361 = vsel %vm360, %v358, 0.0
        %362 = vadd.xlane.f32.xlu0 %v361
        %v363 = vpop.xlane.xlu0 %362
        %v364 = vsel %vm360, %v359, 0.0
        %365 = vadd.xlane.f32.xlu0 %v364
        %v366 = vpop.xlane.xlu0 %365
        %v367 = vrcp.pop 64.0
        %v368 = vmul.f32 64.0, %v367
        %v369 = vsub.f32 1.0, %v368
        %v370 = vmul.f32 %v367, %v369
        %v371 = vadd.f32 %v367, %v370
        %vm372 = vweird.f32 %v367
        %v373 = vsel %vm372, %v367, %v371
        %v374 = vmul.f32 %v363, %v373
        %v375 = vmul.f32 %v366, %v373
        %v376 = vadd.f32 %v374, 1.1920929e-07
        %v377 = vadd.f32 %v375, 1.1920929e-07
        %v378 = vrsqrt.pop %v376
        %v379 = vmul.f32 %v378, %v376
        %v380 = vmul.f32 %v379, %v378
        %v381 = vmul.f32 0.5, %v380
        %v382 = vsub.f32 1.5, %v381
        %v383 = vmul.f32 %v378, %v382
        %vm384 = vweird.f32 %v376
        %vm385 = vweird.f32 %v378
        %vm386 = vmor %vm384, %vm385
        %v387 = vsel %vm386, %v378, %v383
        %v388 = vrsqrt.pop %v377
        %v389 = vmul.f32 %v388, %v377
        %v390 = vmul.f32 %v389, %v388
        %v391 = vmul.f32 0.5, %v390
        %v392 = vsub.f32 1.5, %v391
        %v393 = vmul.f32 %v388, %v392
        %vm394 = vweird.f32 %v377
        %vm395 = vweird.f32 %v388
        %vm396 = vmor %vm394, %vm395
        %v397 = vsel %vm396, %v388, %v393
        %v398 = vmul.f32 %v355, %v387
        %v399 = vmul.f32 %v356, %v397
        %v401 = vperm.slane %v357, 0
        %v403 = vmul.f32 %v398, %v401
        %v404 = vmul.f32 %v399, %v401
        %v405 = vpack.c.bf16 %v404, %v403
        %v406 = vld [vmem:[#allocation7] sm:$0xf]
        %v407 = vld [vmem:[#allocation7 + $0x4] sm:$0xf]
        %v408 = vld [vmem:[#allocation7 + $0x8] sm:$0xf]
        %v409 = vld [vmem:[#allocation7 + $0xc] sm:$0xf]
        %v410 = vld [vmem:[#allocation7 + $0x10] sm:$0xf]
        %v411 = vld [vmem:[#allocation7 + $0x14] sm:$0xf]
        %v412 = vld [vmem:[#allocation7 + $0x18] sm:$0xf]
        %v413 = vld [vmem:[#allocation7 + $0x1c] sm:$0xf]
        %v422 = vunpack.c.l.b16 %v406
        %v423 = vunpack.c.l.b16 %v407
        %v424 = vunpack.c.l.b16 %v408
        %v425 = vunpack.c.l.b16 %v409
        %v426 = vunpack.c.l.b16 %v410
        %v427 = vunpack.c.l.b16 %v411
        %v428 = vunpack.c.l.b16 %v412
        %v429 = vunpack.c.l.b16 %v413
        %v430 = vpack.c.b16 %v423, %v422
        %v431 = vpack.c.b16 %v425, %v424
        %v432 = vpack.c.b16 %v427, %v426
        %v433 = vpack.c.b16 %v429, %v428
        %v439 = vsel %vm360, %v405, 0
        %441 = vmatpush.bf16.msra.mxu0 0
        %442 = vmatpush.bf16.msra.mxu0 0
        %443 = vmatpush.bf16.msra.mxu0 0
        %444 = vmatpush.bf16.msra.mxu0 0
        %445 = vmatpush.bf16.msra.mxu0 %v433
        %446 = vmatpush.bf16.msra.mxu0 %v432
        %447 = vmatpush.bf16.msra.mxu0 %v431
        %448 = vmatpush.bf16.msra.mxu0 %v430
        %449 = vmatmul.bf16.gmra.mxu0 %v439
        %v450 = vpop.f32.mrf.mxu0
        %v451 = vadd.f32 0.0, %v450
        %v452 = vpop.f32.mrf.mxu0
        %v453 = vadd.f32 0.0, %v452
        %454 = vdwg.mxu0
        %v455 = vld [vmem:[#allocation8] sm:$0xf]
        %v456 = vld [vmem:[#allocation8 + $0x4] sm:$0xf]
        %v457 = vld [vmem:[#allocation8 + $0x8] sm:$0xf]
        %v458 = vld [vmem:[#allocation8 + $0xc] sm:$0xf]
        %v459 = vld [vmem:[#allocation8 + $0x10] sm:$0xf]
        %v460 = vld [vmem:[#allocation8 + $0x14] sm:$0xf]
        %v461 = vld [vmem:[#allocation8 + $0x18] sm:$0xf]
        %v462 = vld [vmem:[#allocation8 + $0x1c] sm:$0xf]
        %v471 = vunpack.c.l.b16 %v455
        %v472 = vunpack.c.l.b16 %v456
        %v473 = vunpack.c.l.b16 %v457
        %v474 = vunpack.c.l.b16 %v458
        %v475 = vunpack.c.l.b16 %v459
        %v476 = vunpack.c.l.b16 %v460
        %v477 = vunpack.c.l.b16 %v461
        %v478 = vunpack.c.l.b16 %v462
        %v479 = vpack.c.b16 %v472, %v471
        %v480 = vpack.c.b16 %v474, %v473
        %v481 = vpack.c.b16 %v476, %v475
        %v482 = vpack.c.b16 %v478, %v477
        %487 = vmatpush.bf16.msra.mxu0 0
        %488 = vmatpush.bf16.msra.mxu0 0
        %489 = vmatpush.bf16.msra.mxu0 0
        %490 = vmatpush.bf16.msra.mxu0 0
        %491 = vmatpush.bf16.msra.mxu0 %v482
        %492 = vmatpush.bf16.msra.mxu0 %v481
        %493 = vmatpush.bf16.msra.mxu0 %v480
        %494 = vmatpush.bf16.msra.mxu0 %v479
        %495 = vmatmul.bf16.gmra.mxu0 %v439
        %v496 = vpop.f32.mrf.mxu0
        %v497 = vadd.f32 0.0, %v496
        %v498 = vpop.f32.mrf.mxu0
        %v499 = vadd.f32 0.0, %v498
        %500 = vdwg.mxu0
        %v501 = vld [vmem:[%s4] sm:$0x1]
        %v502 = vmul.f32 %v451, %v451
        %v503 = vmul.f32 %v453, %v453
        %vm504 = vcmask 130048
        %v505 = vsel %vm504, %v502, 0.0
        %506 = vadd.xlane.f32.xlu0 %v505
        %v507 = vpop.xlane.xlu0 %506
        %v508 = vsel %vm504, %v503, 0.0
        %509 = vadd.xlane.f32.xlu0 %v508
        %v510 = vpop.xlane.xlu0 %509
        %v511 = vrcp.pop 16.0
        %v512 = vmul.f32 16.0, %v511
        %v513 = vsub.f32 1.0, %v512
        %v514 = vmul.f32 %v511, %v513
        %v515 = vadd.f32 %v511, %v514
        %vm516 = vweird.f32 %v511
        %v517 = vsel %vm516, %v511, %v515
        %v518 = vmul.f32 %v507, %v517
        %v519 = vmul.f32 %v510, %v517
        %v520 = vadd.f32 %v518, 1.1920929e-07
        %v521 = vadd.f32 %v519, 1.1920929e-07
        %v522 = vrsqrt.pop %v520
        %v523 = vmul.f32 %v522, %v520
        %v524 = vmul.f32 %v523, %v522
        %v525 = vmul.f32 0.5, %v524
        %v526 = vsub.f32 1.5, %v525
        %v527 = vmul.f32 %v522, %v526
        %vm528 = vweird.f32 %v520
        %vm529 = vweird.f32 %v522
        %vm530 = vmor %vm528, %vm529
        %v531 = vsel %vm530, %v522, %v527
        %v532 = vrsqrt.pop %v521
        %v533 = vmul.f32 %v532, %v521
        %v534 = vmul.f32 %v533, %v532
        %v535 = vmul.f32 0.5, %v534
        %v536 = vsub.f32 1.5, %v535
        %v537 = vmul.f32 %v532, %v536
        %vm538 = vweird.f32 %v521
        %vm539 = vweird.f32 %v532
        %vm540 = vmor %vm538, %vm539
        %v541 = vsel %vm540, %v532, %v537
        %v542 = vmul.f32 %v451, %v531
        %v543 = vmul.f32 %v453, %v541
        %v545 = vperm.slane %v501, 0
        %v547 = vmul.f32 %v542, %v545
        %v548 = vmul.f32 %v543, %v545
        %v549 = vpack.c.bf16 %v547, %v547
        %v550 = vpack.c.bf16 %v548, %v548
        %553 = vrot.lane.b32.xlu0 %v502, 112
        %v554 = vpop.permute.xlu0 %553
        %555 = vrot.lane.b32.xlu0 %v503, 112
        %v556 = vpop.permute.xlu0 %555
        %v559 = vsel %vm504, %v554, 0.0
        %560 = vadd.xlane.f32.xlu0 %v559
        %v561 = vpop.xlane.xlu0 %560
        %v562 = vsel %vm504, %v556, 0.0
        %563 = vadd.xlane.f32.xlu0 %v562
        %v564 = vpop.xlane.xlu0 %563
        %v565 = vmul.f32 %v561, %v517
        %v566 = vmul.f32 %v564, %v517
        %v567 = vadd.f32 %v565, 1.1920929e-07
        %v568 = vadd.f32 %v566, 1.1920929e-07
        %v569 = vrsqrt.pop %v567
        %v570 = vmul.f32 %v569, %v567
        %v571 = vmul.f32 %v570, %v569
        %v572 = vmul.f32 0.5, %v571
        %v573 = vsub.f32 1.5, %v572
        %v574 = vmul.f32 %v569, %v573
        %vm575 = vweird.f32 %v567
        %vm576 = vweird.f32 %v569
        %vm577 = vmor %vm575, %vm576
        %v578 = vsel %vm577, %v569, %v574
        %v579 = vrsqrt.pop %v568
        %v580 = vmul.f32 %v579, %v568
        %v581 = vmul.f32 %v580, %v579
        %v582 = vmul.f32 0.5, %v581
        %v583 = vsub.f32 1.5, %v582
        %v584 = vmul.f32 %v579, %v583
        %vm585 = vweird.f32 %v568
        %vm586 = vweird.f32 %v579
        %vm587 = vmor %vm585, %vm586
        %v588 = vsel %vm587, %v579, %v584
        %v589 = vmul.f32 %v451, %v578
        %v590 = vmul.f32 %v453, %v588
        %591 = vrot.lane.b32.xlu0 %v545, 16
        %v592 = vpop.permute.xlu0 %591
        %v594 = vmul.f32 %v589, %v592
        %v595 = vmul.f32 %v590, %v592
        %v596 = vpack.c.bf16 %v594, %v594
        %v597 = vpack.c.bf16 %v595, %v595
        %598 = vrot.lane.b32.xlu0 %v502, 96
        %v599 = vpop.permute.xlu0 %598
        %600 = vrot.lane.b32.xlu0 %v503, 96
        %v601 = vpop.permute.xlu0 %600
        %v604 = vsel %vm504, %v599, 0.0
        %605 = vadd.xlane.f32.xlu0 %v604
        %v606 = vpop.xlane.xlu0 %605
        %v607 = vsel %vm504, %v601, 0.0
        %608 = vadd.xlane.f32.xlu0 %v607
        %v609 = vpop.xlane.xlu0 %608
        %v610 = vmul.f32 %v606, %v517
        %v611 = vmul.f32 %v609, %v517
        %v612 = vadd.f32 %v610, 1.1920929e-07
        %v613 = vadd.f32 %v611, 1.1920929e-07
        %v614 = vrsqrt.pop %v612
        %v615 = vmul.f32 %v614, %v612
        %v616 = vmul.f32 %v615, %v614
        %v617 = vmul.f32 0.5, %v616
        %v618 = vsub.f32 1.5, %v617
        %v619 = vmul.f32 %v614, %v618
        %vm620 = vweird.f32 %v612
        %vm621 = vweird.f32 %v614
        %vm622 = vmor %vm620, %vm621
        %v623 = vsel %vm622, %v614, %v619
        %v624 = vrsqrt.pop %v613
        %v625 = vmul.f32 %v624, %v613
        %v626 = vmul.f32 %v625, %v624
        %v627 = vmul.f32 0.5, %v626
        %v628 = vsub.f32 1.5, %v627
        %v629 = vmul.f32 %v624, %v628
        %vm630 = vweird.f32 %v613
        %vm631 = vweird.f32 %v624
        %vm632 = vmor %vm630, %vm631
        %v633 = vsel %vm632, %v624, %v629
        %v634 = vmul.f32 %v451, %v623
        %v635 = vmul.f32 %v453, %v633
        %636 = vrot.lane.b32.xlu0 %v545, 32
        %v637 = vpop.permute.xlu0 %636
        %v639 = vmul.f32 %v634, %v637
        %v640 = vmul.f32 %v635, %v637
        %v641 = vpack.c.bf16 %v639, %v639
        %v642 = vpack.c.bf16 %v640, %v640
        %643 = vrot.lane.b32.xlu0 %v502, 80
        %v644 = vpop.permute.xlu0 %643
        %645 = vrot.lane.b32.xlu0 %v503, 80
        %v646 = vpop.permute.xlu0 %645
        %v649 = vsel %vm504, %v644, 0.0
        %650 = vadd.xlane.f32.xlu0 %v649
        %v651 = vpop.xlane.xlu0 %650
        %v652 = vsel %vm504, %v646, 0.0
        %653 = vadd.xlane.f32.xlu0 %v652
        %v654 = vpop.xlane.xlu0 %653
        %v655 = vmul.f32 %v651, %v517
        %v656 = vmul.f32 %v654, %v517
        %v657 = vadd.f32 %v655, 1.1920929e-07
        %v658 = vadd.f32 %v656, 1.1920929e-07
        %v659 = vrsqrt.pop %v657
        %v660 = vmul.f32 %v659, %v657
        %v661 = vmul.f32 %v660, %v659
        %v662 = vmul.f32 0.5, %v661
        %v663 = vsub.f32 1.5, %v662
        %v664 = vmul.f32 %v659, %v663
        %vm665 = vweird.f32 %v657
        %vm666 = vweird.f32 %v659
        %vm667 = vmor %vm665, %vm666
        %v668 = vsel %vm667, %v659, %v664
        %v669 = vrsqrt.pop %v658
        %v670 = vmul.f32 %v669, %v658
        %v671 = vmul.f32 %v670, %v669
        %v672 = vmul.f32 0.5, %v671
        %v673 = vsub.f32 1.5, %v672
        %v674 = vmul.f32 %v669, %v673
        %vm675 = vweird.f32 %v658
        %vm676 = vweird.f32 %v669
        %vm677 = vmor %vm675, %vm676
        %v678 = vsel %vm677, %v669, %v674
        %v679 = vmul.f32 %v451, %v668
        %v680 = vmul.f32 %v453, %v678
        %681 = vrot.lane.b32.xlu0 %v545, 48
        %v682 = vpop.permute.xlu0 %681
        %v684 = vmul.f32 %v679, %v682
        %v685 = vmul.f32 %v680, %v682
        %v686 = vpack.c.bf16 %v684, %v684
        %v687 = vpack.c.bf16 %v685, %v685
        %v690 = vunpack.c.l.b16 %v549
        %v691 = vunpack.c.l.b16 %v550
        %v692 = vpack.c.b16 %v691, %v690
        %v695 = vunpack.c.l.b16 %v596
        %v696 = vunpack.c.l.b16 %v597
        %v697 = vpack.c.b16 %v696, %v695
        %v700 = vunpack.c.l.b16 %v641
        %v701 = vunpack.c.l.b16 %v642
        %v702 = vpack.c.b16 %v701, %v700
        %v705 = vunpack.c.l.b16 %v686
        %v706 = vunpack.c.l.b16 %v687
        %v707 = vpack.c.b16 %v706, %v705
        %v710 = vsel %vm504, %v692, %v697
        %vm711 = vcmask 261120
        %v713 = vsel %vm711, %v710, %v702
        %vm714 = vcmask 392192
        %v716 = vsel %vm714, %v713, %v707
        %v718 = vunpack.c.l.b16 %v716
        %v719 = vunpack.c.h.b16 %v716
        %v720 = vpack.c.b16 %v718, %v718
        %v721 = vpack.c.b16 %v719, %v719
        %vm724 = vcmask 519168
        %725 = vst.msk [vmem:[%s343] sm:$0xf] %vm724, %v720
        %726 = vst.msk [vmem:[%s343 + $0x4] sm:$0xf] %vm724, %v721
        %v727 = vpack.c.bf16 %v497, %v497
        %v728 = vpack.c.bf16 %v499, %v499
        %729 = vst.msk [vmem:[%s350] sm:$0xf] %vm724, %v727
        %730 = vst.msk [vmem:[%s350 + $0x4] sm:$0xf] %vm724, %v728
        %s731 = sand.u32 %s163, 1
        %s732 = scalar_lea.sflag [#allocation4], %s731
        %s733 = sand.u32 %s163, 1
        %s734 = smul.addr %s733, 8
        %s735 = scalar_lea.vmem [#allocation10], %s734
        %s736 = sand.u32 %s191, 1
        %s737 = scalar_lea.sflag [#allocation12], %s736
        %s738 = sand.u32 %s191, 1
        %s739 = smul.addr %s738, 8
        %s740 = scalar_lea.vmem [#allocation11], %s739
        // Predicated region
        $region57: #{tpu_custom_call.1} parent=39 // pred_check
          %p741 = pneg %p173
        $region58: #{tpu_custom_call.1} parent=39 // pred_check_branch
          %743 = sbr.rel (%p741) target = $region60
        $region59: #{tpu_custom_call.1} parent=39 // pred_region
          %s744 = smul.u32 2, %s34
          %746 = vsyncadd %s732, 0
          %s747 = smul.addr %s33, 2
          %s748 = sadd.s32 %s744, %s747
          %s749 = smul.addr %s748, 4
          %s750 = scalar_lea.hbm %s5, %s749
          %s751 = sshll.u32 %s735, 4
          %s752 = int_to_ptr.vmem [resolvable:$true] %s751
          %s753 = sshll.u32 %s750, 4
          %s754 = int_to_ptr.hbm [resolvable:$true] %s753
          %759 = dma.vmem_to_hbm [thread:$0]  %s752, 128, %s754, %s732, 64, 64, 4
        $region60: #{tpu_custom_call.1} parent=39 // pred_fallthru
          _
        // Predicated region
        $region61: #{tpu_custom_call.1} parent=39 // pred_check
          %p760 = pneg %p201
        $region62: #{tpu_custom_call.1} parent=39 // pred_check_branch
          %762 = sbr.rel (%p760) target = $region64
        $region63: #{tpu_custom_call.1} parent=39 // pred_region
          %s763 = smul.u32 2, %s34
          %765 = vsyncadd %s737, 0
          %s766 = smul.addr %s33, 2
          %s767 = sadd.s32 %s763, %s766
          %s768 = smul.addr %s767, 4
          %s769 = scalar_lea.hbm %s6, %s768
          %s770 = sshll.u32 %s740, 4
          %s771 = int_to_ptr.vmem [resolvable:$true] %s770
          %s772 = sshll.u32 %s769, 4
          %s773 = int_to_ptr.hbm [resolvable:$true] %s772
          %778 = dma.vmem_to_hbm [thread:$0]  %s771, 128, %s773, %s737, 64, 64, 4
        $region64: #{tpu_custom_call.1} parent=39 // pred_fallthru
          _
      $region40: #{tpu_custom_call.1} parent=5 // pred_fallthru
        _
      %p779 = scmp.le.s32.totalorder 2, %s24
      // Predicated region
      $region65: #{tpu_custom_call.1} parent=5 // pred_check
        %p780 = pneg %p779
      $region66: #{tpu_custom_call.1} parent=5 // pred_check_branch
        %782 = sbr.rel (%p780) target = $region68
      $region67: #{tpu_custom_call.1} parent=5 // pred_region
        %s783 = ssub.s32 %s24, 2
        // Predicated region
        $region69: #{tpu_custom_call.1} parent=67 // pred_check
          %p784 = pneg %p179
        $region70: #{tpu_custom_call.1} parent=67 // pred_check_branch
          %786 = sbr.rel (%p784) target = $region72
        $region71: #{tpu_custom_call.1} parent=67 // pred_region
          %s787 = sand.u32 %s164, 1
          %s788 = scalar_lea.sflag [#allocation4], %s787
          %s789 = sand.u32 %s164, 1
          %s790 = smul.addr %s789, 8
          %s791 = scalar_lea.vmem [#allocation10], %s790
          %793 = dma.done %s788, 128
        $region72: #{tpu_custom_call.1} parent=67 // pred_fallthru
          _
        // Predicated region
        $region73: #{tpu_custom_call.1} parent=67 // pred_check
          %p794 = pneg %p207
        $region74: #{tpu_custom_call.1} parent=67 // pred_check_branch
          %796 = sbr.rel (%p794) target = $region76
        $region75: #{tpu_custom_call.1} parent=67 // pred_region
          %s797 = sand.u32 %s192, 1
          %s798 = scalar_lea.sflag [#allocation12], %s797
          %s799 = sand.u32 %s192, 1
          %s800 = smul.addr %s799, 8
          %s801 = scalar_lea.vmem [#allocation11], %s800
          %803 = dma.done %s798, 128
        $region76: #{tpu_custom_call.1} parent=67 // pred_fallthru
          _
      $region68: #{tpu_custom_call.1} parent=5 // pred_fallthru
        _
    $region6: #{tpu_custom_call.1} parent=1 // loop_footer
      %s28 = sadd.s32 1, %s24
    $region7: #{tpu_custom_call.1} parent=1 // loop_footer_branch
      %23 = sbr.rel target = $region3
    $region8: #{tpu_custom_call.1} parent=1 // loop_exit
      _
    %804 = vsyncpa [#allocation3], 1
    %s805 = scalar_lea.sflag [#allocation3], 1
    %806 = vsyncpa %s805, 1
    %807 = vsyncpa [#allocation6], 1
    %808 = vsyncpa [#allocation9], 1
    %809 = vsyncpa [#allocation4], 1
    %s810 = scalar_lea.sflag [#allocation4], 1
    %811 = vsyncpa %s810, 1
    %812 = vsyncpa [#allocation12], 1
    %s813 = scalar_lea.sflag [#allocation12], 1
    %814 = vsyncpa %s813, 1

</llo_original>
